<compile_context>
chip_gen: v7x
topology: tpu7x:2x2x1
jax: 0.10.0
libtpu: 0.0.40
codegen_flags: <defaults>
</compile_context>

<pallas_src>
import functools

import jax
import jax.numpy as jnp
from jax import lax
from jax.experimental import pallas as pl
from jax.experimental.pallas import tpu as pltpu


GB = 128            # lane-aligned gate-block width (one vreg of lanes)
SUB = 8             # f32 sublane multiple

# MXU operand dtype.  On v6e/v7x set to jnp.bfloat16 (accumulation stays f32
# via preferred_element_type and all gate math stays f32) for faster per-step
# MXU issue on the serial chain; re-verify the recurrence tolerance if enabled.
MXU_DTYPE = jnp.float32


# ----------------------------------------------------------------------------
# Pallas kernel: whole BiGRU + Linear forward (tiny shapes, fully VMEM-resident)
# TODO(synk): for large T*BP*H, switch to a T-chunked grid (carry h in VMEM,
# T axis "arbitrary") plus a "parallel" batch axis so v7x's 2nd TensorCore is
# used; at these toy shapes a single grid-less invocation is fastest.
# ----------------------------------------------------------------------------
def bigru_kernel(x_ref, wih_f_ref, wih_b_ref, bih_ref, whh_ref, bhn_ref,
                 wl_f_ref, wl_b_ref, blin_ref,
                 out_ref,
                 ha_ref, hb_ref,
                 *, T, BP):
    mxu = MXU_DTYPE

    # (1) Hoisted input->hidden projection: two MXU matmuls cover all T steps
    #     and both directions (fwd weights populate cols [0:H] of each 128-lane
    #     gate block, bwd weights cols [H:2H]).  Row t*BP+b = batch b, time t.
    #     b_ih (+ folded b_hh[r,z]) is added once, outside the loop.
    xf = x_ref[...].astype(mxu)                                   # (T*BP, D)
    gi_f = jnp.dot(xf, wih_f_ref[...].astype(mxu),
                   preferred_element_type=jnp.float32) + bih_ref[...]
    gi_b = jnp.dot(xf, wih_b_ref[...].astype(mxu),
                   preferred_element_type=jnp.float32)

    whh = whh_ref[...].astype(mxu)                                # (GB, 3*GB)
    bhn = jnp.broadcast_to(bhn_ref[...], (BP, GB))                # hoisted broadcast

    # (2) Fused fwd+bwd recurrence, fully unrolled (T is a small static int).
    #     h = [h_fwd | h_bwd | 0] is exactly one (8, 128) f32 vreg.
    h = jnp.zeros((BP, GB), jnp.float32)
    for t in range(T):
        # forward consumes x[t], backward consumes x[T-1-t]; both slices are
        # static, 8-sublane aligned and full lane width (no masking).
        g = gi_f[t * BP:(t + 1) * BP, :] + gi_b[(T - 1 - t) * BP:(T - t) * BP, :]
        gh = jnp.dot(h.astype(mxu), whh, preferred_element_type=jnp.float32)
        r = jax.nn.sigmoid(g[:, 0:GB] + gh[:, 0:GB])              # [r_f|r_b|pad]
        z = jax.nn.sigmoid(g[:, GB:2 * GB] + gh[:, GB:2 * GB])    # [z_f|z_b|pad]
        n = jnp.tanh(g[:, 2 * GB:3 * GB] + r * (gh[:, 2 * GB:3 * GB] + bhn))
        h = (1.0 - z) * n + z * h
        # Full-vreg unmasked stores: fwd-time-ordered and bwd-time-ordered.
        ha_ref[t * BP:(t + 1) * BP, :] = h
        hb_ref[(T - 1 - t) * BP:(T - t) * BP, :] = h

    # (3) Final Linear: split weights are zero-padded so only the h_f columns
    #     of ha and the h_b columns of hb contribute -> no concat, no copies.
    y = (jnp.dot(ha_ref[...].astype(mxu), wl_f_ref[...].astype(mxu),
                 preferred_element_type=jnp.float32)
         + jnp.dot(hb_ref[...].astype(mxu), wl_b_ref[...].astype(mxu),
                   preferred_element_type=jnp.float32)
         + blin_ref[...])
    out_ref[...] = y                                              # (T*BP, D)


# ----------------------------------------------------------------------------
# One-time parameter packing (outside the per-call path)
# ----------------------------------------------------------------------------
def pack_params(params):
    """Pack torch-layout GRU/Linear weights into the lane-aligned kernel layout."""
    f32 = jnp.float32
    H = params["w_hh_f"].shape[1]
    D = params["w_ih_f"].shape[1]
    assert 2 * H <= GB, "pack_params assumes 2*hidden_size <= 128"
    # TODO(synk): for hidden_size > 64, widen GB to the next multiple of 128.

    def place_gates(w_t, n_rows, row_off, col_off):
        # w_t: (nsrc, 3H) with gate cols (r, z, n).  Place gate k at
        # rows [row_off:row_off+nsrc], cols [k*GB+col_off : k*GB+col_off+H].
        out = jnp.zeros((n_rows, 3 * GB), f32)
        nsrc = w_t.shape[0]
        for k in range(3):
            out = out.at[row_off:row_off + nsrc,
                         k * GB + col_off:k * GB + col_off + H].set(
                w_t[:, k * H:(k + 1) * H])
        return out

    wih_f = place_gates(params["w_ih_f"].T.astype(f32), D, 0, 0)     # (D, 3GB)
    wih_b = place_gates(params["w_ih_b"].T.astype(f32), D, 0, H)     # (D, 3GB)
    whh = (place_gates(params["w_hh_f"].T.astype(f32), GB, 0, 0)
           + place_gates(params["w_hh_b"].T.astype(f32), GB, H, H))  # (GB, 3GB)

    bih = jnp.zeros((1, 3 * GB), f32)
    bif, bib = params["b_ih_f"].astype(f32), params["b_ih_b"].astype(f32)
    bhf, bhb = params["b_hh_f"].astype(f32), params["b_hh_b"].astype(f32)
    for k in range(3):                      # gate order (r, z, n)
        bf = bif[k * H:(k + 1) * H]
        bb = bib[k * H:(k + 1) * H]
        if k < 2:                           # fold b_hh into b_ih for r and z
            bf = bf + bhf[k * H:(k + 1) * H]
            bb = bb + bhb[k * H:(k + 1) * H]
        bih = bih.at[0, k * GB:k * GB + H].set(bf)
        bih = bih.at[0, k * GB + H:k * GB + 2 * H].set(bb)

    bhn = jnp.zeros((1, GB), f32)           # n-gate hidden bias stays inside r*(.)
    bhn = bhn.at[0, 0:H].set(bhf[2 * H:])
    bhn = bhn.at[0, H:2 * H].set(bhb[2 * H:])

    wl = params["w_lin"].T.astype(f32)      # (2H, D)
    d_out = wl.shape[1]
    wl_f = jnp.zeros((GB, d_out), f32).at[0:H, :].set(wl[:H, :])
    wl_b = jnp.zeros((GB, d_out), f32).at[H:2 * H, :].set(wl[H:, :])
    blin = params["b_lin"][None, :].astype(f32)

    return dict(wih_f=wih_f, wih_b=wih_b, bih=bih, whh=whh, bhn=bhn,
                wl_f=wl_f, wl_b=wl_b, blin=blin)


# ----------------------------------------------------------------------------
# Wrapper
# ----------------------------------------------------------------------------
@jax.jit
def bigru_baseline(x, packed):
    """x: (B, T, D) -> (B, T, D), matching BiGRUBaseline.forward."""
    B, T, D = x.shape
    BP = max(SUB, ((B + SUB - 1) // SUB) * SUB)   # pad batch to sublane multiple

    # Minimal wrapper-side prep: time-major + zero-row padding (no reverse /
    # concat / doubled input -- the backward projection happens in-kernel).
    x_tbd = jnp.zeros((T, BP, D), jnp.float32).at[:, :B, :].set(
        jnp.transpose(x, (1, 0, 2)).astype(jnp.float32))
    x_flat = x_tbd.reshape(T * BP, D)

    kernel = functools.partial(bigru_kernel, T=T, BP=BP)
    out_flat = pl.pallas_call(
        kernel,
        out_shape=jax.ShapeDtypeStruct((T * BP, D), jnp.float32),
        in_specs=[pl.BlockSpec(memory_space=pltpu.MemorySpace.VMEM)] * 9,
        out_specs=pl.BlockSpec(memory_space=pltpu.MemorySpace.VMEM),
        scratch_shapes=[
            pltpu.VMEM((T * BP, GB), jnp.float32),   # fwd-time-ordered states
            pltpu.VMEM((T * BP, GB), jnp.float32),   # bwd-time-ordered states
        ],
    )(x_flat, packed["wih_f"], packed["wih_b"], packed["bih"], packed["whh"],
      packed["bhn"], packed["wl_f"], packed["wl_b"], packed["blin"])

    out = out_flat.reshape(T, BP, D)[:, :B, :]
    return jnp.transpose(out, (1, 0, 2))             # (B, T, D)


# ----------------------------------------------------------------------------
# Deterministic parameter init (matches torch.nn.GRU / nn.Linear shapes)
# ----------------------------------------------------------------------------
def make_params(key, D, H):
    ks = jax.random.split(key, 10)
    s = 1.0 / float(H) ** 0.5
    sl = 1.0 / float(2 * H) ** 0.5
    u = lambda k, shape, b: jax.random.uniform(k, shape, jnp.float32, -b, b)
    return dict(
        w_ih_f=u(ks[0], (3 * H, D), s), w_hh_f=u(ks[1], (3 * H, H), s),
        b_ih_f=u(ks[2], (3 * H,), s),   b_hh_f=u(ks[3], (3 * H,), s),
        w_ih_b=u(ks[4], (3 * H, D), s), w_hh_b=u(ks[5], (3 * H, H), s),
        b_ih_b=u(ks[6], (3 * H,), s),   b_hh_b=u(ks[7], (3 * H,), s),
        w_lin=u(ks[8], (D, 2 * H), sl), b_lin=u(ks[9], (D,), sl),
    )


# ----------------------------------------------------------------------------
# Pure-JAX reference (PyTorch GRU semantics) for verification
# ----------------------------------------------------------------------------
def bigru_reference(x, params):
    B, T, D = x.shape
    H = params["w_hh_f"].shape[1]

    def run_dir(wih, whh, bih, bhh, reverse):
        def cell(h, x_t):
            gi = x_t @ wih.T + bih
            gh = h @ whh.T + bhh
            r = jax.nn.sigmoid(gi[:, :H] + gh[:, :H])
            z = jax.nn.sigmoid(gi[:, H:2 * H] + gh[:, H:2 * H])
            n = jnp.tanh(gi[:, 2 * H:] + r * gh[:, 2 * H:])
            h_new = (1.0 - z) * n + z * h
            return h_new, h_new

        xs = jnp.transpose(x, (1, 0, 2))
        _, hs = lax.scan(cell, jnp.zeros((B, H), jnp.float32), xs, reverse=reverse)
        return jnp.transpose(hs, (1, 0, 2))

    hf = run_dir(params["w_ih_f"], params["w_hh_f"],
                 params["b_ih_f"], params["b_hh_f"], reverse=False)
    hb = run_dir(params["w_ih_b"], params["w_hh_b"],
                 params["b_ih_b"], params["b_hh_b"], reverse=True)
    out = jnp.concatenate([hf, hb], axis=-1)
    return out @ params["w_lin"].T + params["b_lin"]


if __name__ == "__main__":
    key = jax.random.PRNGKey(0)
    kx, kp = jax.random.split(key)

    B, T, D, H = 2, 8, 8, 32        # batch=2, seq=8, input_size=8, hidden=32
    x = jax.random.normal(kx, (B, T, D), jnp.float32)
    params = make_params(kp, D, H)
    packed = pack_params(params)     # one-time weight packing

    out = bigru_baseline(x, packed)
    jax.block_until_ready(out)

    ref = bigru_reference(x, params)
    assert out.shape == (B, T, D), out.shape
    max_err = float(jnp.max(jnp.abs(out - ref)))
    assert jnp.allclose(out, ref, rtol=2e-3, atol=2e-3), max_err

    print("KERNEL_OK")
</pallas_src>

<mosaic_0001>
module attributes {stable_mosaic.version = 11 : i64} {
  func.func @bigru_kernel(%arg0: memref<64x8xf32, #tpu.memory_space<vmem>>, %arg1: memref<8x384xf32, #tpu.memory_space<vmem>>, %arg2: memref<8x384xf32, #tpu.memory_space<vmem>>, %arg3: memref<1x384xf32, #tpu.memory_space<vmem>>, %arg4: memref<128x384xf32, #tpu.memory_space<vmem>>, %arg5: memref<1x128xf32, #tpu.memory_space<vmem>>, %arg6: memref<128x8xf32, #tpu.memory_space<vmem>>, %arg7: memref<128x8xf32, #tpu.memory_space<vmem>>, %arg8: memref<1x8xf32, #tpu.memory_space<vmem>>, %arg9: memref<64x8xf32, #tpu.memory_space<vmem>>, %arg10: memref<64x128xf32, #tpu.memory_space<vmem>>, %arg11: memref<64x128xf32, #tpu.memory_space<vmem>>) attributes {dimension_semantics = [], scalar_prefetch = 0 : i64, scratch_operands = 2 : i64, tpu.core_type = #tpu.core_type<tc>} {
    %c0 = arith.constant 0 : index
    %c0_0 = arith.constant 0 : index
    %0 = vector.load %arg0[%c0, %c0_0] : memref<64x8xf32, #tpu.memory_space<vmem>>, vector<64x8xf32>
    %c0_1 = arith.constant 0 : index
    %c0_2 = arith.constant 0 : index
    %1 = vector.load %arg1[%c0_1, %c0_2] : memref<8x384xf32, #tpu.memory_space<vmem>>, vector<8x384xf32>
    %cst = arith.constant dense<0.000000e+00> : vector<64x384xf32>
    %2 = tpu.matmul %0, %1, %cst {dimension_numbers = #tpu.dot_dimension_numbers<[1], [0], [0], [1], [0, 0, 1, 1], [], []>} : vector<64x8xf32>, vector<8x384xf32>, vector<64x384xf32> -> vector<64x384xf32>
    %c0_3 = arith.constant 0 : index
    %c0_4 = arith.constant 0 : index
    %3 = vector.load %arg3[%c0_3, %c0_4] : memref<1x384xf32, #tpu.memory_space<vmem>>, vector<1x384xf32>
    %4 = vector.broadcast %3 : vector<1x384xf32> to vector<64x384xf32>
    %5 = arith.addf %2, %4 : vector<64x384xf32>
    %c0_5 = arith.constant 0 : index
    %c0_6 = arith.constant 0 : index
    %6 = vector.load %arg2[%c0_5, %c0_6] : memref<8x384xf32, #tpu.memory_space<vmem>>, vector<8x384xf32>
    %cst_7 = arith.constant dense<0.000000e+00> : vector<64x384xf32>
    %7 = tpu.matmul %0, %6, %cst_7 {dimension_numbers = #tpu.dot_dimension_numbers<[1], [0], [0], [1], [0, 0, 1, 1], [], []>} : vector<64x8xf32>, vector<8x384xf32>, vector<64x384xf32> -> vector<64x384xf32>
    %c0_8 = arith.constant 0 : index
    %c0_9 = arith.constant 0 : index
    %8 = vector.load %arg4[%c0_8, %c0_9] : memref<128x384xf32, #tpu.memory_space<vmem>>, vector<128x384xf32>
    %c0_10 = arith.constant 0 : index
    %c0_11 = arith.constant 0 : index
    %9 = vector.load %arg5[%c0_10, %c0_11] : memref<1x128xf32, #tpu.memory_space<vmem>>, vector<1x128xf32>
    %10 = vector.shape_cast %9 : vector<1x128xf32> to vector<1x128xf32>
    %11 = vector.broadcast %10 : vector<1x128xf32> to vector<8x128xf32>
    %cst_12 = arith.constant 0.000000e+00 : f32
    %12 = vector.broadcast %cst_12 : f32 to vector<8x128xf32>
    %13 = vector.extract_strided_slice %5 {offsets = [0, 0], sizes = [8, 384], strides = [1, 1]} : vector<64x384xf32> to vector<8x384xf32>
    %14 = vector.extract_strided_slice %7 {offsets = [56, 0], sizes = [8, 384], strides = [1, 1]} : vector<64x384xf32> to vector<8x384xf32>
    %15 = arith.addf %13, %14 : vector<8x384xf32>
    %cst_13 = arith.constant dense<0.000000e+00> : vector<8x384xf32>
    %16 = tpu.matmul %12, %8, %cst_13 {dimension_numbers = #tpu.dot_dimension_numbers<[1], [0], [0], [1], [0, 0, 1, 1], [], []>} : vector<8x128xf32>, vector<128x384xf32>, vector<8x384xf32> -> vector<8x384xf32>
    %17 = vector.extract_strided_slice %15 {offsets = [0, 0], sizes = [8, 128], strides = [1, 1]} : vector<8x384xf32> to vector<8x128xf32>
    %18 = vector.extract_strided_slice %16 {offsets = [0, 0], sizes = [8, 128], strides = [1, 1]} : vector<8x384xf32> to vector<8x128xf32>
    %19 = arith.addf %17, %18 : vector<8x128xf32>
    %20 = arith.negf %19 : vector<8x128xf32>
    %21 = math.exp %20 : vector<8x128xf32>
    %cst_14 = arith.constant 1.000000e+00 : f32
    %22 = vector.broadcast %cst_14 : f32 to vector<8x128xf32>
    %23 = arith.addf %22, %21 : vector<8x128xf32>
    %24 = arith.divf %22, %23 : vector<8x128xf32>
    %25 = vector.extract_strided_slice %15 {offsets = [0, 128], sizes = [8, 128], strides = [1, 1]} : vector<8x384xf32> to vector<8x128xf32>
    %26 = vector.extract_strided_slice %16 {offsets = [0, 128], sizes = [8, 128], strides = [1, 1]} : vector<8x384xf32> to vector<8x128xf32>
    %27 = arith.addf %25, %26 : vector<8x128xf32>
    %28 = arith.negf %27 : vector<8x128xf32>
    %29 = math.exp %28 : vector<8x128xf32>
    %cst_15 = arith.constant 1.000000e+00 : f32
    %30 = vector.broadcast %cst_15 : f32 to vector<8x128xf32>
    %31 = arith.addf %30, %29 : vector<8x128xf32>
    %32 = arith.divf %30, %31 : vector<8x128xf32>
    %33 = vector.extract_strided_slice %15 {offsets = [0, 256], sizes = [8, 128], strides = [1, 1]} : vector<8x384xf32> to vector<8x128xf32>
    %34 = vector.extract_strided_slice %16 {offsets = [0, 256], sizes = [8, 128], strides = [1, 1]} : vector<8x384xf32> to vector<8x128xf32>
    %35 = arith.addf %34, %11 : vector<8x128xf32>
    %36 = arith.mulf %24, %35 : vector<8x128xf32>
    %37 = arith.addf %33, %36 : vector<8x128xf32>
    %38 = math.tanh %37 : vector<8x128xf32>
    %cst_16 = arith.constant 1.000000e+00 : f32
    %39 = vector.broadcast %cst_16 : f32 to vector<8x128xf32>
    %40 = arith.subf %39, %32 : vector<8x128xf32>
    %41 = arith.mulf %40, %38 : vector<8x128xf32>
    %42 = arith.mulf %32, %12 : vector<8x128xf32>
    %43 = arith.addf %41, %42 : vector<8x128xf32>
    %c0_17 = arith.constant 0 : index
    %c0_18 = arith.constant 0 : index
    %44 = vector.load %arg10[%c0_17, %c0_18] : memref<64x128xf32, #tpu.memory_space<vmem>>, vector<8x128xf32>
    tpu.vector_store %arg10[%c0_17, %c0_18], %43 {strides = array<i32>} : memref<64x128xf32, #tpu.memory_space<vmem>>, vector<8x128xf32>,
    %c56 = arith.constant 56 : index
    %c0_19 = arith.constant 0 : index
    %45 = vector.load %arg11[%c56, %c0_19] : memref<64x128xf32, #tpu.memory_space<vmem>>, vector<8x128xf32>
    tpu.vector_store %arg11[%c56, %c0_19], %43 {strides = array<i32>} : memref<64x128xf32, #tpu.memory_space<vmem>>, vector<8x128xf32>,
    %46 = vector.extract_strided_slice %5 {offsets = [8, 0], sizes = [8, 384], strides = [1, 1]} : vector<64x384xf32> to vector<8x384xf32>
    %47 = vector.extract_strided_slice %7 {offsets = [48, 0], sizes = [8, 384], strides = [1, 1]} : vector<64x384xf32> to vector<8x384xf32>
    %48 = arith.addf %46, %47 : vector<8x384xf32>
    %cst_20 = arith.constant dense<0.000000e+00> : vector<8x384xf32>
    %49 = tpu.matmul %43, %8, %cst_20 {dimension_numbers = #tpu.dot_dimension_numbers<[1], [0], [0], [1], [0, 0, 1, 1], [], []>} : vector<8x128xf32>, vector<128x384xf32>, vector<8x384xf32> -> vector<8x384xf32>
    %50 = vector.extract_strided_slice %48 {offsets = [0, 0], sizes = [8, 128], strides = [1, 1]} : vector<8x384xf32> to vector<8x128xf32>
    %51 = vector.extract_strided_slice %49 {offsets = [0, 0], sizes = [8, 128], strides = [1, 1]} : vector<8x384xf32> to vector<8x128xf32>
    %52 = arith.addf %50, %51 : vector<8x128xf32>
    %53 = arith.negf %52 : vector<8x128xf32>
    %54 = math.exp %53 : vector<8x128xf32>
    %cst_21 = arith.constant 1.000000e+00 : f32
    %55 = vector.broadcast %cst_21 : f32 to vector<8x128xf32>
    %56 = arith.addf %55, %54 : vector<8x128xf32>
    %57 = arith.divf %55, %56 : vector<8x128xf32>
    %58 = vector.extract_strided_slice %48 {offsets = [0, 128], sizes = [8, 128], strides = [1, 1]} : vector<8x384xf32> to vector<8x128xf32>
    %59 = vector.extract_strided_slice %49 {offsets = [0, 128], sizes = [8, 128], strides = [1, 1]} : vector<8x384xf32> to vector<8x128xf32>
    %60 = arith.addf %58, %59 : vector<8x128xf32>
    %61 = arith.negf %60 : vector<8x128xf32>
    %62 = math.exp %61 : vector<8x128xf32>
    %cst_22 = arith.constant 1.000000e+00 : f32
    %63 = vector.broadcast %cst_22 : f32 to vector<8x128xf32>
    %64 = arith.addf %63, %62 : vector<8x128xf32>
    %65 = arith.divf %63, %64 : vector<8x128xf32>
    %66 = vector.extract_strided_slice %48 {offsets = [0, 256], sizes = [8, 128], strides = [1, 1]} : vector<8x384xf32> to vector<8x128xf32>
    %67 = vector.extract_strided_slice %49 {offsets = [0, 256], sizes = [8, 128], strides = [1, 1]} : vector<8x384xf32> to vector<8x128xf32>
    %68 = arith.addf %67, %11 : vector<8x128xf32>
    %69 = arith.mulf %57, %68 : vector<8x128xf32>
    %70 = arith.addf %66, %69 : vector<8x128xf32>
    %71 = math.tanh %70 : vector<8x128xf32>
    %cst_23 = arith.constant 1.000000e+00 : f32
    %72 = vector.broadcast %cst_23 : f32 to vector<8x128xf32>
    %73 = arith.subf %72, %65 : vector<8x128xf32>
    %74 = arith.mulf %73, %71 : vector<8x128xf32>
    %75 = arith.mulf %65, %43 : vector<8x128xf32>
    %76 = arith.addf %74, %75 : vector<8x128xf32>
    %c8 = arith.constant 8 : index
    %c0_24 = arith.constant 0 : index
    %77 = vector.load %arg10[%c8, %c0_24] : memref<64x128xf32, #tpu.memory_space<vmem>>, vector<8x128xf32>
    tpu.vector_store %arg10[%c8, %c0_24], %76 {strides = array<i32>} : memref<64x128xf32, #tpu.memory_space<vmem>>, vector<8x128xf32>,
    %c48 = arith.constant 48 : index
    %c0_25 = arith.constant 0 : index
    %78 = vector.load %arg11[%c48, %c0_25] : memref<64x128xf32, #tpu.memory_space<vmem>>, vector<8x128xf32>
    tpu.vector_store %arg11[%c48, %c0_25], %76 {strides = array<i32>} : memref<64x128xf32, #tpu.memory_space<vmem>>, vector<8x128xf32>,
    %79 = vector.extract_strided_slice %5 {offsets = [16, 0], sizes = [8, 384], strides = [1, 1]} : vector<64x384xf32> to vector<8x384xf32>
    %80 = vector.extract_strided_slice %7 {offsets = [40, 0], sizes = [8, 384], strides = [1, 1]} : vector<64x384xf32> to vector<8x384xf32>
    %81 = arith.addf %79, %80 : vector<8x384xf32>
    %cst_26 = arith.constant dense<0.000000e+00> : vector<8x384xf32>
    %82 = tpu.matmul %76, %8, %cst_26 {dimension_numbers = #tpu.dot_dimension_numbers<[1], [0], [0], [1], [0, 0, 1, 1], [], []>} : vector<8x128xf32>, vector<128x384xf32>, vector<8x384xf32> -> vector<8x384xf32>
    %83 = vector.extract_strided_slice %81 {offsets = [0, 0], sizes = [8, 128], strides = [1, 1]} : vector<8x384xf32> to vector<8x128xf32>
    %84 = vector.extract_strided_slice %82 {offsets = [0, 0], sizes = [8, 128], strides = [1, 1]} : vector<8x384xf32> to vector<8x128xf32>
    %85 = arith.addf %83, %84 : vector<8x128xf32>
    %86 = arith.negf %85 : vector<8x128xf32>
    %87 = math.exp %86 : vector<8x128xf32>
    %cst_27 = arith.constant 1.000000e+00 : f32
    %88 = vector.broadcast %cst_27 : f32 to vector<8x128xf32>
    %89 = arith.addf %88, %87 : vector<8x128xf32>
    %90 = arith.divf %88, %89 : vector<8x128xf32>
    %91 = vector.extract_strided_slice %81 {offsets = [0, 128], sizes = [8, 128], strides = [1, 1]} : vector<8x384xf32> to vector<8x128xf32>
    %92 = vector.extract_strided_slice %82 {offsets = [0, 128], sizes = [8, 128], strides = [1, 1]} : vector<8x384xf32> to vector<8x128xf32>
    %93 = arith.addf %91, %92 : vector<8x128xf32>
    %94 = arith.negf %93 : vector<8x128xf32>
    %95 = math.exp %94 : vector<8x128xf32>
    %cst_28 = arith.constant 1.000000e+00 : f32
    %96 = vector.broadcast %cst_28 : f32 to vector<8x128xf32>
    %97 = arith.addf %96, %95 : vector<8x128xf32>
    %98 = arith.divf %96, %97 : vector<8x128xf32>
    %99 = vector.extract_strided_slice %81 {offsets = [0, 256], sizes = [8, 128], strides = [1, 1]} : vector<8x384xf32> to vector<8x128xf32>
    %100 = vector.extract_strided_slice %82 {offsets = [0, 256], sizes = [8, 128], strides = [1, 1]} : vector<8x384xf32> to vector<8x128xf32>
    %101 = arith.addf %100, %11 : vector<8x128xf32>
    %102 = arith.mulf %90, %101 : vector<8x128xf32>
    %103 = arith.addf %99, %102 : vector<8x128xf32>
    %104 = math.tanh %103 : vector<8x128xf32>
    %cst_29 = arith.constant 1.000000e+00 : f32
    %105 = vector.broadcast %cst_29 : f32 to vector<8x128xf32>
    %106 = arith.subf %105, %98 : vector<8x128xf32>
    %107 = arith.mulf %106, %104 : vector<8x128xf32>
    %108 = arith.mulf %98, %76 : vector<8x128xf32>
    %109 = arith.addf %107, %108 : vector<8x128xf32>
    %c16 = arith.constant 16 : index
    %c0_30 = arith.constant 0 : index
    %110 = vector.load %arg10[%c16, %c0_30] : memref<64x128xf32, #tpu.memory_space<vmem>>, vector<8x128xf32>
    tpu.vector_store %arg10[%c16, %c0_30], %109 {strides = array<i32>} : memref<64x128xf32, #tpu.memory_space<vmem>>, vector<8x128xf32>,
    %c40 = arith.constant 40 : index
    %c0_31 = arith.constant 0 : index
    %111 = vector.load %arg11[%c40, %c0_31] : memref<64x128xf32, #tpu.memory_space<vmem>>, vector<8x128xf32>
    tpu.vector_store %arg11[%c40, %c0_31], %109 {strides = array<i32>} : memref<64x128xf32, #tpu.memory_space<vmem>>, vector<8x128xf32>,
    %112 = vector.extract_strided_slice %5 {offsets = [24, 0], sizes = [8, 384], strides = [1, 1]} : vector<64x384xf32> to vector<8x384xf32>
    %113 = vector.extract_strided_slice %7 {offsets = [32, 0], sizes = [8, 384], strides = [1, 1]} : vector<64x384xf32> to vector<8x384xf32>
    %114 = arith.addf %112, %113 : vector<8x384xf32>
    %cst_32 = arith.constant dense<0.000000e+00> : vector<8x384xf32>
    %115 = tpu.matmul %109, %8, %cst_32 {dimension_numbers = #tpu.dot_dimension_numbers<[1], [0], [0], [1], [0, 0, 1, 1], [], []>} : vector<8x128xf32>, vector<128x384xf32>, vector<8x384xf32> -> vector<8x384xf32>
    %116 = vector.extract_strided_slice %114 {offsets = [0, 0], sizes = [8, 128], strides = [1, 1]} : vector<8x384xf32> to vector<8x128xf32>
    %117 = vector.extract_strided_slice %115 {offsets = [0, 0], sizes = [8, 128], strides = [1, 1]} : vector<8x384xf32> to vector<8x128xf32>
    %118 = arith.addf %116, %117 : vector<8x128xf32>
    %119 = arith.negf %118 : vector<8x128xf32>
    %120 = math.exp %119 : vector<8x128xf32>
    %cst_33 = arith.constant 1.000000e+00 : f32
    %121 = vector.broadcast %cst_33 : f32 to vector<8x128xf32>
    %122 = arith.addf %121, %120 : vector<8x128xf32>
    %123 = arith.divf %121, %122 : vector<8x128xf32>
    %124 = vector.extract_strided_slice %114 {offsets = [0, 128], sizes = [8, 128], strides = [1, 1]} : vector<8x384xf32> to vector<8x128xf32>
    %125 = vector.extract_strided_slice %115 {offsets = [0, 128], sizes = [8, 128], strides = [1, 1]} : vector<8x384xf32> to vector<8x128xf32>
    %126 = arith.addf %124, %125 : vector<8x128xf32>
    %127 = arith.negf %126 : vector<8x128xf32>
    %128 = math.exp %127 : vector<8x128xf32>
    %cst_34 = arith.constant 1.000000e+00 : f32
    %129 = vector.broadcast %cst_34 : f32 to vector<8x128xf32>
    %130 = arith.addf %129, %128 : vector<8x128xf32>
    %131 = arith.divf %129, %130 : vector<8x128xf32>
    %132 = vector.extract_strided_slice %114 {offsets = [0, 256], sizes = [8, 128], strides = [1, 1]} : vector<8x384xf32> to vector<8x128xf32>
    %133 = vector.extract_strided_slice %115 {offsets = [0, 256], sizes = [8, 128], strides = [1, 1]} : vector<8x384xf32> to vector<8x128xf32>
    %134 = arith.addf %133, %11 : vector<8x128xf32>
    %135 = arith.mulf %123, %134 : vector<8x128xf32>
    %136 = arith.addf %132, %135 : vector<8x128xf32>
    %137 = math.tanh %136 : vector<8x128xf32>
    %cst_35 = arith.constant 1.000000e+00 : f32
    %138 = vector.broadcast %cst_35 : f32 to vector<8x128xf32>
    %139 = arith.subf %138, %131 : vector<8x128xf32>
    %140 = arith.mulf %139, %137 : vector<8x128xf32>
    %141 = arith.mulf %131, %109 : vector<8x128xf32>
    %142 = arith.addf %140, %141 : vector<8x128xf32>
    %c24 = arith.constant 24 : index
    %c0_36 = arith.constant 0 : index
    %143 = vector.load %arg10[%c24, %c0_36] : memref<64x128xf32, #tpu.memory_space<vmem>>, vector<8x128xf32>
    tpu.vector_store %arg10[%c24, %c0_36], %142 {strides = array<i32>} : memref<64x128xf32, #tpu.memory_space<vmem>>, vector<8x128xf32>,
    %c32 = arith.constant 32 : index
    %c0_37 = arith.constant 0 : index
    %144 = vector.load %arg11[%c32, %c0_37] : memref<64x128xf32, #tpu.memory_space<vmem>>, vector<8x128xf32>
    tpu.vector_store %arg11[%c32, %c0_37], %142 {strides = array<i32>} : memref<64x128xf32, #tpu.memory_space<vmem>>, vector<8x128xf32>,
    %145 = vector.extract_strided_slice %5 {offsets = [32, 0], sizes = [8, 384], strides = [1, 1]} : vector<64x384xf32> to vector<8x384xf32>
    %146 = vector.extract_strided_slice %7 {offsets = [24, 0], sizes = [8, 384], strides = [1, 1]} : vector<64x384xf32> to vector<8x384xf32>
    %147 = arith.addf %145, %146 : vector<8x384xf32>
    %cst_38 = arith.constant dense<0.000000e+00> : vector<8x384xf32>
    %148 = tpu.matmul %142, %8, %cst_38 {dimension_numbers = #tpu.dot_dimension_numbers<[1], [0], [0], [1], [0, 0, 1, 1], [], []>} : vector<8x128xf32>, vector<128x384xf32>, vector<8x384xf32> -> vector<8x384xf32>
    %149 = vector.extract_strided_slice %147 {offsets = [0, 0], sizes = [8, 128], strides = [1, 1]} : vector<8x384xf32> to vector<8x128xf32>
    %150 = vector.extract_strided_slice %148 {offsets = [0, 0], sizes = [8, 128], strides = [1, 1]} : vector<8x384xf32> to vector<8x128xf32>
    %151 = arith.addf %149, %150 : vector<8x128xf32>
    %152 = arith.negf %151 : vector<8x128xf32>
    %153 = math.exp %152 : vector<8x128xf32>
    %cst_39 = arith.constant 1.000000e+00 : f32
    %154 = vector.broadcast %cst_39 : f32 to vector<8x128xf32>
    %155 = arith.addf %154, %153 : vector<8x128xf32>
    %156 = arith.divf %154, %155 : vector<8x128xf32>
    %157 = vector.extract_strided_slice %147 {offsets = [0, 128], sizes = [8, 128], strides = [1, 1]} : vector<8x384xf32> to vector<8x128xf32>
    %158 = vector.extract_strided_slice %148 {offsets = [0, 128], sizes = [8, 128], strides = [1, 1]} : vector<8x384xf32> to vector<8x128xf32>
    %159 = arith.addf %157, %158 : vector<8x128xf32>
    %160 = arith.negf %159 : vector<8x128xf32>
    %161 = math.exp %160 : vector<8x128xf32>
    %cst_40 = arith.constant 1.000000e+00 : f32
    %162 = vector.broadcast %cst_40 : f32 to vector<8x128xf32>
    %163 = arith.addf %162, %161 : vector<8x128xf32>
    %164 = arith.divf %162, %163 : vector<8x128xf32>
    %165 = vector.extract_strided_slice %147 {offsets = [0, 256], sizes = [8, 128], strides = [1, 1]} : vector<8x384xf32> to vector<8x128xf32>
    %166 = vector.extract_strided_slice %148 {offsets = [0, 256], sizes = [8, 128], strides = [1, 1]} : vector<8x384xf32> to vector<8x128xf32>
    %167 = arith.addf %166, %11 : vector<8x128xf32>
    %168 = arith.mulf %156, %167 : vector<8x128xf32>
    %169 = arith.addf %165, %168 : vector<8x128xf32>
    %170 = math.tanh %169 : vector<8x128xf32>
    %cst_41 = arith.constant 1.000000e+00 : f32
    %171 = vector.broadcast %cst_41 : f32 to vector<8x128xf32>
    %172 = arith.subf %171, %164 : vector<8x128xf32>
    %173 = arith.mulf %172, %170 : vector<8x128xf32>
    %174 = arith.mulf %164, %142 : vector<8x128xf32>
    %175 = arith.addf %173, %174 : vector<8x128xf32>
    %c32_42 = arith.constant 32 : index
    %c0_43 = arith.constant 0 : index
    %176 = vector.load %arg10[%c32_42, %c0_43] : memref<64x128xf32, #tpu.memory_space<vmem>>, vector<8x128xf32>
    tpu.vector_store %arg10[%c32_42, %c0_43], %175 {strides = array<i32>} : memref<64x128xf32, #tpu.memory_space<vmem>>, vector<8x128xf32>,
    %c24_44 = arith.constant 24 : index
    %c0_45 = arith.constant 0 : index
    %177 = vector.load %arg11[%c24_44, %c0_45] : memref<64x128xf32, #tpu.memory_space<vmem>>, vector<8x128xf32>
    tpu.vector_store %arg11[%c24_44, %c0_45], %175 {strides = array<i32>} : memref<64x128xf32, #tpu.memory_space<vmem>>, vector<8x128xf32>,
    %178 = vector.extract_strided_slice %5 {offsets = [40, 0], sizes = [8, 384], strides = [1, 1]} : vector<64x384xf32> to vector<8x384xf32>
    %179 = vector.extract_strided_slice %7 {offsets = [16, 0], sizes = [8, 384], strides = [1, 1]} : vector<64x384xf32> to vector<8x384xf32>
    %180 = arith.addf %178, %179 : vector<8x384xf32>
    %cst_46 = arith.constant dense<0.000000e+00> : vector<8x384xf32>
    %181 = tpu.matmul %175, %8, %cst_46 {dimension_numbers = #tpu.dot_dimension_numbers<[1], [0], [0], [1], [0, 0, 1, 1], [], []>} : vector<8x128xf32>, vector<128x384xf32>, vector<8x384xf32> -> vector<8x384xf32>
    %182 = vector.extract_strided_slice %180 {offsets = [0, 0], sizes = [8, 128], strides = [1, 1]} : vector<8x384xf32> to vector<8x128xf32>
    %183 = vector.extract_strided_slice %181 {offsets = [0, 0], sizes = [8, 128], strides = [1, 1]} : vector<8x384xf32> to vector<8x128xf32>
    %184 = arith.addf %182, %183 : vector<8x128xf32>
    %185 = arith.negf %184 : vector<8x128xf32>
    %186 = math.exp %185 : vector<8x128xf32>
    %cst_47 = arith.constant 1.000000e+00 : f32
    %187 = vector.broadcast %cst_47 : f32 to vector<8x128xf32>
    %188 = arith.addf %187, %186 : vector<8x128xf32>
    %189 = arith.divf %187, %188 : vector<8x128xf32>
    %190 = vector.extract_strided_slice %180 {offsets = [0, 128], sizes = [8, 128], strides = [1, 1]} : vector<8x384xf32> to vector<8x128xf32>
    %191 = vector.extract_strided_slice %181 {offsets = [0, 128], sizes = [8, 128], strides = [1, 1]} : vector<8x384xf32> to vector<8x128xf32>
    %192 = arith.addf %190, %191 : vector<8x128xf32>
    %193 = arith.negf %192 : vector<8x128xf32>
    %194 = math.exp %193 : vector<8x128xf32>
    %cst_48 = arith.constant 1.000000e+00 : f32
    %195 = vector.broadcast %cst_48 : f32 to vector<8x128xf32>
    %196 = arith.addf %195, %194 : vector<8x128xf32>
    %197 = arith.divf %195, %196 : vector<8x128xf32>
    %198 = vector.extract_strided_slice %180 {offsets = [0, 256], sizes = [8, 128], strides = [1, 1]} : vector<8x384xf32> to vector<8x128xf32>
    %199 = vector.extract_strided_slice %181 {offsets = [0, 256], sizes = [8, 128], strides = [1, 1]} : vector<8x384xf32> to vector<8x128xf32>
    %200 = arith.addf %199, %11 : vector<8x128xf32>
    %201 = arith.mulf %189, %200 : vector<8x128xf32>
    %202 = arith.addf %198, %201 : vector<8x128xf32>
    %203 = math.tanh %202 : vector<8x128xf32>
    %cst_49 = arith.constant 1.000000e+00 : f32
    %204 = vector.broadcast %cst_49 : f32 to vector<8x128xf32>
    %205 = arith.subf %204, %197 : vector<8x128xf32>
    %206 = arith.mulf %205, %203 : vector<8x128xf32>
    %207 = arith.mulf %197, %175 : vector<8x128xf32>
    %208 = arith.addf %206, %207 : vector<8x128xf32>
    %c40_50 = arith.constant 40 : index
    %c0_51 = arith.constant 0 : index
    %209 = vector.load %arg10[%c40_50, %c0_51] : memref<64x128xf32, #tpu.memory_space<vmem>>, vector<8x128xf32>
    tpu.vector_store %arg10[%c40_50, %c0_51], %208 {strides = array<i32>} : memref<64x128xf32, #tpu.memory_space<vmem>>, vector<8x128xf32>,
    %c16_52 = arith.constant 16 : index
    %c0_53 = arith.constant 0 : index
    %210 = vector.load %arg11[%c16_52, %c0_53] : memref<64x128xf32, #tpu.memory_space<vmem>>, vector<8x128xf32>
    tpu.vector_store %arg11[%c16_52, %c0_53], %208 {strides = array<i32>} : memref<64x128xf32, #tpu.memory_space<vmem>>, vector<8x128xf32>,
    %211 = vector.extract_strided_slice %5 {offsets = [48, 0], sizes = [8, 384], strides = [1, 1]} : vector<64x384xf32> to vector<8x384xf32>
    %212 = vector.extract_strided_slice %7 {offsets = [8, 0], sizes = [8, 384], strides = [1, 1]} : vector<64x384xf32> to vector<8x384xf32>
    %213 = arith.addf %211, %212 : vector<8x384xf32>
    %cst_54 = arith.constant dense<0.000000e+00> : vector<8x384xf32>
    %214 = tpu.matmul %208, %8, %cst_54 {dimension_numbers = #tpu.dot_dimension_numbers<[1], [0], [0], [1], [0, 0, 1, 1], [], []>} : vector<8x128xf32>, vector<128x384xf32>, vector<8x384xf32> -> vector<8x384xf32>
    %215 = vector.extract_strided_slice %213 {offsets = [0, 0], sizes = [8, 128], strides = [1, 1]} : vector<8x384xf32> to vector<8x128xf32>
    %216 = vector.extract_strided_slice %214 {offsets = [0, 0], sizes = [8, 128], strides = [1, 1]} : vector<8x384xf32> to vector<8x128xf32>
    %217 = arith.addf %215, %216 : vector<8x128xf32>
    %218 = arith.negf %217 : vector<8x128xf32>
    %219 = math.exp %218 : vector<8x128xf32>
    %cst_55 = arith.constant 1.000000e+00 : f32
    %220 = vector.broadcast %cst_55 : f32 to vector<8x128xf32>
    %221 = arith.addf %220, %219 : vector<8x128xf32>
    %222 = arith.divf %220, %221 : vector<8x128xf32>
    %223 = vector.extract_strided_slice %213 {offsets = [0, 128], sizes = [8, 128], strides = [1, 1]} : vector<8x384xf32> to vector<8x128xf32>
    %224 = vector.extract_strided_slice %214 {offsets = [0, 128], sizes = [8, 128], strides = [1, 1]} : vector<8x384xf32> to vector<8x128xf32>
    %225 = arith.addf %223, %224 : vector<8x128xf32>
    %226 = arith.negf %225 : vector<8x128xf32>
    %227 = math.exp %226 : vector<8x128xf32>
    %cst_56 = arith.constant 1.000000e+00 : f32
    %228 = vector.broadcast %cst_56 : f32 to vector<8x128xf32>
    %229 = arith.addf %228, %227 : vector<8x128xf32>
    %230 = arith.divf %228, %229 : vector<8x128xf32>
    %231 = vector.extract_strided_slice %213 {offsets = [0, 256], sizes = [8, 128], strides = [1, 1]} : vector<8x384xf32> to vector<8x128xf32>
    %232 = vector.extract_strided_slice %214 {offsets = [0, 256], sizes = [8, 128], strides = [1, 1]} : vector<8x384xf32> to vector<8x128xf32>
    %233 = arith.addf %232, %11 : vector<8x128xf32>
    %234 = arith.mulf %222, %233 : vector<8x128xf32>
    %235 = arith.addf %231, %234 : vector<8x128xf32>
    %236 = math.tanh %235 : vector<8x128xf32>
    %cst_57 = arith.constant 1.000000e+00 : f32
    %237 = vector.broadcast %cst_57 : f32 to vector<8x128xf32>
    %238 = arith.subf %237, %230 : vector<8x128xf32>
    %239 = arith.mulf %238, %236 : vector<8x128xf32>
    %240 = arith.mulf %230, %208 : vector<8x128xf32>
    %241 = arith.addf %239, %240 : vector<8x128xf32>
    %c48_58 = arith.constant 48 : index
    %c0_59 = arith.constant 0 : index
    %242 = vector.load %arg10[%c48_58, %c0_59] : memref<64x128xf32, #tpu.memory_space<vmem>>, vector<8x128xf32>
    tpu.vector_store %arg10[%c48_58, %c0_59], %241 {strides = array<i32>} : memref<64x128xf32, #tpu.memory_space<vmem>>, vector<8x128xf32>,
    %c8_60 = arith.constant 8 : index
    %c0_61 = arith.constant 0 : index
    %243 = vector.load %arg11[%c8_60, %c0_61] : memref<64x128xf32, #tpu.memory_space<vmem>>, vector<8x128xf32>
    tpu.vector_store %arg11[%c8_60, %c0_61], %241 {strides = array<i32>} : memref<64x128xf32, #tpu.memory_space<vmem>>, vector<8x128xf32>,
    %244 = vector.extract_strided_slice %5 {offsets = [56, 0], sizes = [8, 384], strides = [1, 1]} : vector<64x384xf32> to vector<8x384xf32>
    %245 = vector.extract_strided_slice %7 {offsets = [0, 0], sizes = [8, 384], strides = [1, 1]} : vector<64x384xf32> to vector<8x384xf32>
    %246 = arith.addf %244, %245 : vector<8x384xf32>
    %cst_62 = arith.constant dense<0.000000e+00> : vector<8x384xf32>
    %247 = tpu.matmul %241, %8, %cst_62 {dimension_numbers = #tpu.dot_dimension_numbers<[1], [0], [0], [1], [0, 0, 1, 1], [], []>} : vector<8x128xf32>, vector<128x384xf32>, vector<8x384xf32> -> vector<8x384xf32>
    %248 = vector.extract_strided_slice %246 {offsets = [0, 0], sizes = [8, 128], strides = [1, 1]} : vector<8x384xf32> to vector<8x128xf32>
    %249 = vector.extract_strided_slice %247 {offsets = [0, 0], sizes = [8, 128], strides = [1, 1]} : vector<8x384xf32> to vector<8x128xf32>
    %250 = arith.addf %248, %249 : vector<8x128xf32>
    %251 = arith.negf %250 : vector<8x128xf32>
    %252 = math.exp %251 : vector<8x128xf32>
    %cst_63 = arith.constant 1.000000e+00 : f32
    %253 = vector.broadcast %cst_63 : f32 to vector<8x128xf32>
    %254 = arith.addf %253, %252 : vector<8x128xf32>
    %255 = arith.divf %253, %254 : vector<8x128xf32>
    %256 = vector.extract_strided_slice %246 {offsets = [0, 128], sizes = [8, 128], strides = [1, 1]} : vector<8x384xf32> to vector<8x128xf32>
    %257 = vector.extract_strided_slice %247 {offsets = [0, 128], sizes = [8, 128], strides = [1, 1]} : vector<8x384xf32> to vector<8x128xf32>
    %258 = arith.addf %256, %257 : vector<8x128xf32>
    %259 = arith.negf %258 : vector<8x128xf32>
    %260 = math.exp %259 : vector<8x128xf32>
    %cst_64 = arith.constant 1.000000e+00 : f32
    %261 = vector.broadcast %cst_64 : f32 to vector<8x128xf32>
    %262 = arith.addf %261, %260 : vector<8x128xf32>
    %263 = arith.divf %261, %262 : vector<8x128xf32>
    %264 = vector.extract_strided_slice %246 {offsets = [0, 256], sizes = [8, 128], strides = [1, 1]} : vector<8x384xf32> to vector<8x128xf32>
    %265 = vector.extract_strided_slice %247 {offsets = [0, 256], sizes = [8, 128], strides = [1, 1]} : vector<8x384xf32> to vector<8x128xf32>
    %266 = arith.addf %265, %11 : vector<8x128xf32>
    %267 = arith.mulf %255, %266 : vector<8x128xf32>
    %268 = arith.addf %264, %267 : vector<8x128xf32>
    %269 = math.tanh %268 : vector<8x128xf32>
    %cst_65 = arith.constant 1.000000e+00 : f32
    %270 = vector.broadcast %cst_65 : f32 to vector<8x128xf32>
    %271 = arith.subf %270, %263 : vector<8x128xf32>
    %272 = arith.mulf %271, %269 : vector<8x128xf32>
    %273 = arith.mulf %263, %241 : vector<8x128xf32>
    %274 = arith.addf %272, %273 : vector<8x128xf32>
    %c56_66 = arith.constant 56 : index
    %c0_67 = arith.constant 0 : index
    %275 = vector.load %arg10[%c56_66, %c0_67] : memref<64x128xf32, #tpu.memory_space<vmem>>, vector<8x128xf32>
    tpu.vector_store %arg10[%c56_66, %c0_67], %274 {strides = array<i32>} : memref<64x128xf32, #tpu.memory_space<vmem>>, vector<8x128xf32>,
    %c0_68 = arith.constant 0 : index
    %c0_69 = arith.constant 0 : index
    %276 = vector.load %arg11[%c0_68, %c0_69] : memref<64x128xf32, #tpu.memory_space<vmem>>, vector<8x128xf32>
    tpu.vector_store %arg11[%c0_68, %c0_69], %274 {strides = array<i32>} : memref<64x128xf32, #tpu.memory_space<vmem>>, vector<8x128xf32>,
    %c0_70 = arith.constant 0 : index
    %c0_71 = arith.constant 0 : index
    %277 = vector.load %arg10[%c0_70, %c0_71] : memref<64x128xf32, #tpu.memory_space<vmem>>, vector<64x128xf32>
    %c0_72 = arith.constant 0 : index
    %c0_73 = arith.constant 0 : index
    %278 = vector.load %arg6[%c0_72, %c0_73] : memref<128x8xf32, #tpu.memory_space<vmem>>, vector<128x8xf32>
    %cst_74 = arith.constant dense<0.000000e+00> : vector<64x8xf32>
    %279 = tpu.matmul %277, %278, %cst_74 {dimension_numbers = #tpu.dot_dimension_numbers<[1], [0], [0], [1], [0, 0, 1, 1], [], []>} : vector<64x128xf32>, vector<128x8xf32>, vector<64x8xf32> -> vector<64x8xf32>
    %c0_75 = arith.constant 0 : index
    %c0_76 = arith.constant 0 : index
    %280 = vector.load %arg11[%c0_75, %c0_76] : memref<64x128xf32, #tpu.memory_space<vmem>>, vector<64x128xf32>
    %c0_77 = arith.constant 0 : index
    %c0_78 = arith.constant 0 : index
    %281 = vector.load %arg7[%c0_77, %c0_78] : memref<128x8xf32, #tpu.memory_space<vmem>>, vector<128x8xf32>
    %cst_79 = arith.constant dense<0.000000e+00> : vector<64x8xf32>
    %282 = tpu.matmul %280, %281, %cst_79 {dimension_numbers = #tpu.dot_dimension_numbers<[1], [0], [0], [1], [0, 0, 1, 1], [], []>} : vector<64x128xf32>, vector<128x8xf32>, vector<64x8xf32> -> vector<64x8xf32>
    %283 = arith.addf %279, %282 : vector<64x8xf32>
    %c0_80 = arith.constant 0 : index
    %c0_81 = arith.constant 0 : index
    %284 = vector.load %arg8[%c0_80, %c0_81] : memref<1x8xf32, #tpu.memory_space<vmem>>, vector<1x8xf32>
    %285 = vector.broadcast %284 : vector<1x8xf32> to vector<64x8xf32>
    %286 = arith.addf %283, %285 : vector<64x8xf32>
    %c0_82 = arith.constant 0 : index
    %c0_83 = arith.constant 0 : index
    %287 = vector.load %arg9[%c0_82, %c0_83] : memref<64x8xf32, #tpu.memory_space<vmem>>, vector<64x8xf32>
    tpu.vector_store %arg9[%c0_82, %c0_83], %286 {strides = array<i32>} : memref<64x8xf32, #tpu.memory_space<vmem>>, vector<64x8xf32>,
    return
  }
}

</mosaic_0001>

<llo_original>
// kernel: bigru_baseline.1
$region0: #{bigru_baseline.1}
  #allocation0 [shape = 'u32[]', space=smem, size = 0x4, offset = 0x4, fixed_abs, tag = 'smem constant byte address 0x4 - core index']
  #allocation1 [shape = 'u32[144,128]{1,0:T(1,128)}', space=vmem, size = 0x12000, scoped, tag = 'internal scratch']
  #allocation2 [shape = 'f32[64,128]{1,0:T(8,128)}', space=vmem, size = 0x8000, scoped, tag = 'scratch operand']
  #allocation3 [shape = 'f32[64,128]{1,0:T(8,128)}', space=vmem, size = 0x8000, scoped, tag = 'scratch operand']
  %s0 = inlined_call_operand.vmem [shape: f32[64,8], index: 0, kind: input, shape index: {}]
  %s1 = inlined_call_operand.hbm [shape: f32[8,384], index: 1, kind: input, shape index: {}]
  %s2 = inlined_call_operand.hbm [shape: f32[8,384], index: 2, kind: input, shape index: {}]
  %s3 = inlined_call_operand.vmem [shape: f32[1,384], index: 3, kind: input, shape index: {}]
  %s4 = inlined_call_operand.vmem [shape: f32[128,384], index: 4, kind: input, shape index: {}]
  %s5 = inlined_call_operand.vmem [shape: f32[1,128], index: 5, kind: input, shape index: {}]
  %s6 = inlined_call_operand.vmem [shape: f32[128,8], index: 6, kind: input, shape index: {}]
  %s7 = inlined_call_operand.vmem [shape: f32[128,8], index: 7, kind: input, shape index: {}]
  %s8 = inlined_call_operand.vmem [shape: f32[1,8], index: 8, kind: input, shape index: {}]
  %s9 = inlined_call_operand.vmem [shape: f32[64,8], index: 9, kind: output, shape index: {}]
  %s10 = sld [smem:[#allocation0]]
  $region54: #{bigru_baseline.1} parent=0
    _
  %s12 = ssub.s32 1, %s10
  %s13 = scalar_select 0, %s12, %s10
  $region1: #{bigru_baseline.1} parent=0
    #allocation4 [shape = 'u8[12288]{0}', space=vmem, size = 0x3000, scoped, tag = 'input window, operand 1, single buffered']
    #allocation5 [shape = 's32[1]{0}', space=sflag, size = 0x4, scoped, tag = 'scoped memory for bigru_baseline.1']
    #allocation6 [shape = 'u8[12288]{0}', space=vmem, size = 0x3000, scoped, tag = 'input window, operand 2, single buffered']
    #allocation7 [shape = 's32[1]{0}', space=sflag, size = 0x4, scoped, tag = 'scoped memory for bigru_baseline.1']
    %14 = vsyncpa [#allocation5], 0
    %15 = vsyncpa [#allocation7], 0
    // Predicated region
    $region2: #{bigru_baseline.1} parent=1 // pred_check
      _
    $region3: #{bigru_baseline.1} parent=1 // pred_check_branch
      %17 = sbr.rel (0) target = $region5
    $region4: #{bigru_baseline.1} parent=1 // pred_region
      _
    $region5: #{bigru_baseline.1} parent=1 // pred_fallthru
      _
    // Predicated region
    $region6: #{bigru_baseline.1} parent=1 // pred_check
      _
    $region7: #{bigru_baseline.1} parent=1 // pred_check_branch
      %19 = sbr.rel (0) target = $region9
    $region8: #{bigru_baseline.1} parent=1 // pred_region
      %s21 = ssub.s32 384, 384
      %22 = vsyncadd [#allocation5], %s21
      %s24 = sshll.u32 [#allocation4], 4
      %s25 = int_to_ptr.vmem [resolvable:$true] %s24
      %27 = dma.hbm_to_vmem [thread:$0]  %s1, 384, %s25, [#allocation5]
    $region9: #{bigru_baseline.1} parent=1 // pred_fallthru
      _
    // Predicated region
    $region10: #{bigru_baseline.1} parent=1 // pred_check
      _
    $region11: #{bigru_baseline.1} parent=1 // pred_check_branch
      %29 = sbr.rel (0) target = $region13
    $region12: #{bigru_baseline.1} parent=1 // pred_region
      %s31 = ssub.s32 384, 384
      %32 = vsyncadd [#allocation7], %s31
      %s34 = sshll.u32 [#allocation6], 4
      %s35 = int_to_ptr.vmem [resolvable:$true] %s34
      %37 = dma.hbm_to_vmem [thread:$0]  %s2, 384, %s35, [#allocation7]
    $region13: #{bigru_baseline.1} parent=1 // pred_fallthru
      _
    // Predicated region
    $region14: #{bigru_baseline.1} parent=1 // pred_check
      _
    $region15: #{bigru_baseline.1} parent=1 // pred_check_branch
      %39 = sbr.rel (0) target = $region17
    $region16: #{bigru_baseline.1} parent=1 // pred_region
      _
    $region17: #{bigru_baseline.1} parent=1 // pred_fallthru
      _
    // Predicated region
    $region18: #{bigru_baseline.1} parent=1 // pred_check
      _
    $region19: #{bigru_baseline.1} parent=1 // pred_check_branch
      %41 = sbr.rel (0) target = $region21
    $region20: #{bigru_baseline.1} parent=1 // pred_region
      _
    $region21: #{bigru_baseline.1} parent=1 // pred_fallthru
      _
    // Predicated region
    $region22: #{bigru_baseline.1} parent=1 // pred_check
      _
    $region23: #{bigru_baseline.1} parent=1 // pred_check_branch
      %43 = sbr.rel (0) target = $region25
    $region24: #{bigru_baseline.1} parent=1 // pred_region
      _
    $region25: #{bigru_baseline.1} parent=1 // pred_fallthru
      _
    // Predicated region
    $region26: #{bigru_baseline.1} parent=1 // pred_check
      _
    $region27: #{bigru_baseline.1} parent=1 // pred_check_branch
      %45 = sbr.rel (0) target = $region29
    $region28: #{bigru_baseline.1} parent=1 // pred_region
      _
    $region29: #{bigru_baseline.1} parent=1 // pred_fallthru
      _
    // Predicated region
    $region30: #{bigru_baseline.1} parent=1 // pred_check
      _
    $region31: #{bigru_baseline.1} parent=1 // pred_check_branch
      %47 = sbr.rel (0) target = $region33
    $region32: #{bigru_baseline.1} parent=1 // pred_region
      _
    $region33: #{bigru_baseline.1} parent=1 // pred_fallthru
      _
    // Predicated region
    $region34: #{bigru_baseline.1} parent=1 // pred_check
      _
    $region35: #{bigru_baseline.1} parent=1 // pred_check_branch
      %49 = sbr.rel (0) target = $region37
    $region36: #{bigru_baseline.1} parent=1 // pred_region
      _
    $region37: #{bigru_baseline.1} parent=1 // pred_fallthru
      _
    // Predicated region
    $region38: #{bigru_baseline.1} parent=1 // pred_check
      _
    $region39: #{bigru_baseline.1} parent=1 // pred_check_branch
      %51 = sbr.rel (0) target = $region41
    $region40: #{bigru_baseline.1} parent=1 // pred_region
      %52 = dma.done [#allocation5], 384
    $region41: #{bigru_baseline.1} parent=1 // pred_fallthru
      _
    // Predicated region
    $region42: #{bigru_baseline.1} parent=1 // pred_check
      _
    $region43: #{bigru_baseline.1} parent=1 // pred_check_branch
      %54 = sbr.rel (0) target = $region45
    $region44: #{bigru_baseline.1} parent=1 // pred_region
      %55 = dma.done [#allocation7], 384
    $region45: #{bigru_baseline.1} parent=1 // pred_fallthru
      _
    %v56 = vld [vmem:[%s0] sm:$0xff]
    %v57 = vld [vmem:[%s0 + $0x8] sm:$0xff]
    %v58 = vld [vmem:[%s0 + $0x10] sm:$0xff]
    %v59 = vld [vmem:[%s0 + $0x18] sm:$0xff]
    %v60 = vld [vmem:[%s0 + $0x20] sm:$0xff]
    %v61 = vld [vmem:[%s0 + $0x28] sm:$0xff]
    %v62 = vld [vmem:[%s0 + $0x30] sm:$0xff]
    %v63 = vld [vmem:[%s0 + $0x38] sm:$0xff]
    %v64 = vld [vmem:[#allocation4] sm:$0xff]
    %v65 = vld [vmem:[#allocation4 + $0x8] sm:$0xff]
    %v66 = vld [vmem:[#allocation4 + $0x10] sm:$0xff]
    %v67 = vld [vmem:[%s3] sm:$0x7]
    %v69 = vlaneseq
    %v70 = vshrl.u32 %v69, 7
    %v71 = vsub.s32 0, %v70
    %v72 = vrot.slane %v67, %v71
    %v73 = vlaneseq
    %v74 = vshrl.u32 %v73, 7
    %v75 = vsub.s32 1, %v74
    %v76 = vrot.slane %v67, %v75
    %v77 = vlaneseq
    %v78 = vshrl.u32 %v77, 7
    %v79 = vsub.s32 2, %v78
    %v80 = vrot.slane %v67, %v79
    %vm84 = vcmask 64512
    %v86 = vsel %vm84, %v56, 0
    %v89 = vsel %vm84, %v57, 0
    %v92 = vsel %vm84, %v58, 0
    %v95 = vsel %vm84, %v59, 0
    %v98 = vsel %vm84, %v60, 0
    %v101 = vsel %vm84, %v61, 0
    %v104 = vsel %vm84, %v62, 0
    %v107 = vsel %vm84, %v63, 0
    %109 = vmatprep.subr.mxu0 %v65
    %110 = vmatpush1.msra.mxu0 %v64
    %111 = vmatprep.subr.mxu0 0.0
    %112 = vmatpush1.msra.mxu0 0.0
    %113 = vmatprep.subr.mxu0 0.0
    %114 = vmatpush1.msra.mxu0 0.0
    %115 = vmatprep.subr.mxu0 0.0
    %116 = vmatpush1.msra.mxu0 0.0
    %117 = vmatprep.subr.mxu0 0.0
    %118 = vmatpush1.msra.mxu0 0.0
    %119 = vmatprep.subr.mxu0 0.0
    %120 = vmatpush1.msra.mxu0 0.0
    %121 = vmatprep.subr.mxu0 0.0
    %122 = vmatpush1.msra.mxu0 0.0
    %123 = vmatprep.subr.mxu0 0.0
    %124 = vmatpush1.msra.mxu0 0.0
    %125 = vmatprep.subr.mxu0 0.0
    %126 = vmatpush1.msra.mxu0 0.0
    %127 = vmatprep.subr.mxu0 0.0
    %128 = vmatpush1.msra.mxu0 0.0
    %129 = vmatprep.subr.mxu0 0.0
    %130 = vmatpush1.msra.mxu0 0.0
    %131 = vmatprep.subr.mxu0 0.0
    %132 = vmatpush1.msra.mxu0 0.0
    %133 = vmatprep.subr.mxu0 0.0
    %134 = vmatpush1.msra.mxu0 0.0
    %135 = vmatprep.subr.mxu0 0.0
    %136 = vmatpush1.msra.mxu0 0.0
    %137 = vmatprep.subr.mxu0 0.0
    %138 = vmatpush1.msra.mxu0 0.0
    %139 = vmatprep.subr.mxu0 0.0
    %140 = vmatpush1.msra.mxu0 0.0
    %141 = vmatprep.subr.mxu0 0.0
    %142 = vmatpush1.msra.mxu0 0.0
    %143 = vmatprep.subr.mxu0 0.0
    %144 = vmatpush1.msra.mxu0 0.0
    %145 = vmatprep.subr.mxu0 0.0
    %146 = vmatpush1.msra.mxu0 0.0
    %147 = vmatprep.subr.mxu0 0.0
    %148 = vmatpush1.msra.mxu0 0.0
    %149 = vmatprep.subr.mxu0 0.0
    %150 = vmatpush1.msra.mxu0 0.0
    %151 = vmatprep.subr.mxu0 0.0
    %152 = vmatpush1.msra.mxu0 0.0
    %153 = vmatprep.subr.mxu0 0.0
    %154 = vmatpush1.msra.mxu0 0.0
    %155 = vmatprep.subr.mxu0 0.0
    %156 = vmatpush1.msra.mxu0 0.0
    %157 = vmatprep.subr.mxu0 0.0
    %158 = vmatpush1.msra.mxu0 0.0
    %159 = vmatprep.subr.mxu0 0.0
    %160 = vmatpush1.msra.mxu0 0.0
    %161 = vmatprep.subr.mxu0 0.0
    %162 = vmatpush1.msra.mxu0 0.0
    %163 = vmatprep.subr.mxu0 0.0
    %164 = vmatpush1.msra.mxu0 0.0
    %165 = vmatprep.subr.mxu0 0.0
    %166 = vmatpush1.msra.mxu0 0.0
    %167 = vmatprep.subr.mxu0 0.0
    %168 = vmatpush1.msra.mxu0 0.0
    %169 = vmatprep.subr.mxu0 0.0
    %170 = vmatpush1.msra.mxu0 0.0
    %171 = vmatprep.subr.mxu0 0.0
    %172 = vmatpush1.msra.mxu0 0.0
    %173 = vmatprep.mubr.f32.mxu0 0.0
    %174 = vmatmul.mubr.f32.gmra.mrb[0].mxu0 %v86
    %v175 = vpop.f32.mrb[0].mxu0
    %v176 = vadd.f32 %v72, %v175
    %v177 = vpop.f32.mrb[0].mxu0
    %v178 = vadd.f32 %v76, %v177
    %179 = vmatprep.mubr.f32.mxu0 0.0
    %180 = vmatmul.mubr.f32.gmra.mrb[0].mxu0 %v89
    %v181 = vpop.f32.mrb[0].mxu0
    %v182 = vadd.f32 %v72, %v181
    %v183 = vpop.f32.mrb[0].mxu0
    %v184 = vadd.f32 %v76, %v183
    %185 = vmatprep.mubr.f32.mxu0 0.0
    %186 = vmatmul.mubr.f32.gmra.mrb[0].mxu0 %v92
    %v187 = vpop.f32.mrb[0].mxu0
    %v188 = vadd.f32 %v72, %v187
    %v189 = vpop.f32.mrb[0].mxu0
    %v190 = vadd.f32 %v76, %v189
    %191 = vmatprep.mubr.f32.mxu0 0.0
    %192 = vmatmul.mubr.f32.gmra.mrb[0].mxu0 %v95
    %v193 = vpop.f32.mrb[0].mxu0
    %v194 = vadd.f32 %v72, %v193
    %v195 = vpop.f32.mrb[0].mxu0
    %v196 = vadd.f32 %v76, %v195
    %197 = vmatprep.mubr.f32.mxu0 0.0
    %198 = vmatmul.mubr.f32.gmra.mrb[0].mxu0 %v98
    %v199 = vpop.f32.mrb[0].mxu0
    %v200 = vadd.f32 %v72, %v199
    %v201 = vpop.f32.mrb[0].mxu0
    %v202 = vadd.f32 %v76, %v201
    %203 = vmatprep.mubr.f32.mxu0 0.0
    %204 = vmatmul.mubr.f32.gmra.mrb[0].mxu0 %v101
    %v205 = vpop.f32.mrb[0].mxu0
    %v206 = vadd.f32 %v72, %v205
    %v207 = vpop.f32.mrb[0].mxu0
    %v208 = vadd.f32 %v76, %v207
    %209 = vmatprep.mubr.f32.mxu0 0.0
    %210 = vmatmul.mubr.f32.gmra.mrb[0].mxu0 %v104
    %v211 = vpop.f32.mrb[0].mxu0
    %v212 = vadd.f32 %v72, %v211
    %v213 = vpop.f32.mrb[0].mxu0
    %v214 = vadd.f32 %v76, %v213
    %215 = vmatprep.mubr.f32.mxu0 0.0
    %216 = vmatmul.mubr.f32.gmra.mrb[0].mxu0 %v107
    %v217 = vpop.f32.mrb[0].mxu0
    %v218 = vadd.f32 %v72, %v217
    %v219 = vpop.f32.mrb[0].mxu0
    %v220 = vadd.f32 %v76, %v219
    %221 = vdwg.mxu0
    %222 = vmatprep.subr.mxu0 0.0
    %223 = vmatpush1.msra.mxu0 %v66
    %224 = vmatprep.subr.mxu0 0.0
    %225 = vmatpush1.msra.mxu0 0.0
    %226 = vmatprep.subr.mxu0 0.0
    %227 = vmatpush1.msra.mxu0 0.0
    %228 = vmatprep.subr.mxu0 0.0
    %229 = vmatpush1.msra.mxu0 0.0
    %230 = vmatprep.subr.mxu0 0.0
    %231 = vmatpush1.msra.mxu0 0.0
    %232 = vmatprep.subr.mxu0 0.0
    %233 = vmatpush1.msra.mxu0 0.0
    %234 = vmatprep.subr.mxu0 0.0
    %235 = vmatpush1.msra.mxu0 0.0
    %236 = vmatprep.subr.mxu0 0.0
    %237 = vmatpush1.msra.mxu0 0.0
    %238 = vmatprep.subr.mxu0 0.0
    %239 = vmatpush1.msra.mxu0 0.0
    %240 = vmatprep.subr.mxu0 0.0
    %241 = vmatpush1.msra.mxu0 0.0
    %242 = vmatprep.subr.mxu0 0.0
    %243 = vmatpush1.msra.mxu0 0.0
    %244 = vmatprep.subr.mxu0 0.0
    %245 = vmatpush1.msra.mxu0 0.0
    %246 = vmatprep.subr.mxu0 0.0
    %247 = vmatpush1.msra.mxu0 0.0
    %248 = vmatprep.subr.mxu0 0.0
    %249 = vmatpush1.msra.mxu0 0.0
    %250 = vmatprep.subr.mxu0 0.0
    %251 = vmatpush1.msra.mxu0 0.0
    %252 = vmatprep.subr.mxu0 0.0
    %253 = vmatpush1.msra.mxu0 0.0
    %254 = vmatprep.subr.mxu0 0.0
    %255 = vmatpush1.msra.mxu0 0.0
    %256 = vmatprep.subr.mxu0 0.0
    %257 = vmatpush1.msra.mxu0 0.0
    %258 = vmatprep.subr.mxu0 0.0
    %259 = vmatpush1.msra.mxu0 0.0
    %260 = vmatprep.subr.mxu0 0.0
    %261 = vmatpush1.msra.mxu0 0.0
    %262 = vmatprep.subr.mxu0 0.0
    %263 = vmatpush1.msra.mxu0 0.0
    %264 = vmatprep.subr.mxu0 0.0
    %265 = vmatpush1.msra.mxu0 0.0
    %266 = vmatprep.subr.mxu0 0.0
    %267 = vmatpush1.msra.mxu0 0.0
    %268 = vmatprep.subr.mxu0 0.0
    %269 = vmatpush1.msra.mxu0 0.0
    %270 = vmatprep.subr.mxu0 0.0
    %271 = vmatpush1.msra.mxu0 0.0
    %272 = vmatprep.subr.mxu0 0.0
    %273 = vmatpush1.msra.mxu0 0.0
    %274 = vmatprep.subr.mxu0 0.0
    %275 = vmatpush1.msra.mxu0 0.0
    %276 = vmatprep.subr.mxu0 0.0
    %277 = vmatpush1.msra.mxu0 0.0
    %278 = vmatprep.subr.mxu0 0.0
    %279 = vmatpush1.msra.mxu0 0.0
    %280 = vmatprep.subr.mxu0 0.0
    %281 = vmatpush1.msra.mxu0 0.0
    %282 = vmatprep.subr.mxu0 0.0
    %283 = vmatpush1.msra.mxu0 0.0
    %284 = vmatprep.subr.mxu0 0.0
    %285 = vmatpush1.msra.mxu0 0.0
    %286 = vmatprep.mubr.f32.mxu0 0.0
    %287 = vmatmul.mubr.f32.gmra.mrb[0].mxu0 %v86
    %v288 = vpop.f32.mrb[0].mxu0
    %v289 = vadd.f32 %v80, %v288
    %v290 = vpop.f32.mrb[0].mxu0
    %291 = vmatprep.mubr.f32.mxu0 0.0
    %292 = vmatmul.mubr.f32.gmra.mrb[0].mxu0 %v89
    %v293 = vpop.f32.mrb[0].mxu0
    %v294 = vadd.f32 %v80, %v293
    %v295 = vpop.f32.mrb[0].mxu0
    %296 = vmatprep.mubr.f32.mxu0 0.0
    %297 = vmatmul.mubr.f32.gmra.mrb[0].mxu0 %v92
    %v298 = vpop.f32.mrb[0].mxu0
    %v299 = vadd.f32 %v80, %v298
    %v300 = vpop.f32.mrb[0].mxu0
    %301 = vmatprep.mubr.f32.mxu0 0.0
    %302 = vmatmul.mubr.f32.gmra.mrb[0].mxu0 %v95
    %v303 = vpop.f32.mrb[0].mxu0
    %v304 = vadd.f32 %v80, %v303
    %v305 = vpop.f32.mrb[0].mxu0
    %306 = vmatprep.mubr.f32.mxu0 0.0
    %307 = vmatmul.mubr.f32.gmra.mrb[0].mxu0 %v98
    %v308 = vpop.f32.mrb[0].mxu0
    %v309 = vadd.f32 %v80, %v308
    %v310 = vpop.f32.mrb[0].mxu0
    %311 = vmatprep.mubr.f32.mxu0 0.0
    %312 = vmatmul.mubr.f32.gmra.mrb[0].mxu0 %v101
    %v313 = vpop.f32.mrb[0].mxu0
    %v314 = vadd.f32 %v80, %v313
    %v315 = vpop.f32.mrb[0].mxu0
    %316 = vmatprep.mubr.f32.mxu0 0.0
    %317 = vmatmul.mubr.f32.gmra.mrb[0].mxu0 %v104
    %v318 = vpop.f32.mrb[0].mxu0
    %v319 = vadd.f32 %v80, %v318
    %v320 = vpop.f32.mrb[0].mxu0
    %321 = vmatprep.mubr.f32.mxu0 0.0
    %322 = vmatmul.mubr.f32.gmra.mrb[0].mxu0 %v107
    %v323 = vpop.f32.mrb[0].mxu0
    %v324 = vadd.f32 %v80, %v323
    %v325 = vpop.f32.mrb[0].mxu0
    %326 = vdwg.mxu0
    %v327 = vld [vmem:[#allocation6] sm:$0xff]
    %v328 = vld [vmem:[#allocation6 + $0x8] sm:$0xff]
    %v329 = vld [vmem:[#allocation6 + $0x10] sm:$0xff]
    %330 = vmatprep.subr.mxu0 %v328
    %331 = vmatpush1.msra.mxu0 %v327
    %332 = vmatprep.subr.mxu0 0.0
    %333 = vmatpush1.msra.mxu0 0.0
    %334 = vmatprep.subr.mxu0 0.0
    %335 = vmatpush1.msra.mxu0 0.0
    %336 = vmatprep.subr.mxu0 0.0
    %337 = vmatpush1.msra.mxu0 0.0
    %338 = vmatprep.subr.mxu0 0.0
    %339 = vmatpush1.msra.mxu0 0.0
    %340 = vmatprep.subr.mxu0 0.0
    %341 = vmatpush1.msra.mxu0 0.0
    %342 = vmatprep.subr.mxu0 0.0
    %343 = vmatpush1.msra.mxu0 0.0
    %344 = vmatprep.subr.mxu0 0.0
    %345 = vmatpush1.msra.mxu0 0.0
    %346 = vmatprep.subr.mxu0 0.0
    %347 = vmatpush1.msra.mxu0 0.0
    %348 = vmatprep.subr.mxu0 0.0
    %349 = vmatpush1.msra.mxu0 0.0
    %350 = vmatprep.subr.mxu0 0.0
    %351 = vmatpush1.msra.mxu0 0.0
    %352 = vmatprep.subr.mxu0 0.0
    %353 = vmatpush1.msra.mxu0 0.0
    %354 = vmatprep.subr.mxu0 0.0
    %355 = vmatpush1.msra.mxu0 0.0
    %356 = vmatprep.subr.mxu0 0.0
    %357 = vmatpush1.msra.mxu0 0.0
    %358 = vmatprep.subr.mxu0 0.0
    %359 = vmatpush1.msra.mxu0 0.0
    %360 = vmatprep.subr.mxu0 0.0
    %361 = vmatpush1.msra.mxu0 0.0
    %362 = vmatprep.subr.mxu0 0.0
    %363 = vmatpush1.msra.mxu0 0.0
    %364 = vmatprep.subr.mxu0 0.0
    %365 = vmatpush1.msra.mxu0 0.0
    %366 = vmatprep.subr.mxu0 0.0
    %367 = vmatpush1.msra.mxu0 0.0
    %368 = vmatprep.subr.mxu0 0.0
    %369 = vmatpush1.msra.mxu0 0.0
    %370 = vmatprep.subr.mxu0 0.0
    %371 = vmatpush1.msra.mxu0 0.0
    %372 = vmatprep.subr.mxu0 0.0
    %373 = vmatpush1.msra.mxu0 0.0
    %374 = vmatprep.subr.mxu0 0.0
    %375 = vmatpush1.msra.mxu0 0.0
    %376 = vmatprep.subr.mxu0 0.0
    %377 = vmatpush1.msra.mxu0 0.0
    %378 = vmatprep.subr.mxu0 0.0
    %379 = vmatpush1.msra.mxu0 0.0
    %380 = vmatprep.subr.mxu0 0.0
    %381 = vmatpush1.msra.mxu0 0.0
    %382 = vmatprep.subr.mxu0 0.0
    %383 = vmatpush1.msra.mxu0 0.0
    %384 = vmatprep.subr.mxu0 0.0
    %385 = vmatpush1.msra.mxu0 0.0
    %386 = vmatprep.subr.mxu0 0.0
    %387 = vmatpush1.msra.mxu0 0.0
    %388 = vmatprep.subr.mxu0 0.0
    %389 = vmatpush1.msra.mxu0 0.0
    %390 = vmatprep.subr.mxu0 0.0
    %391 = vmatpush1.msra.mxu0 0.0
    %392 = vmatprep.subr.mxu0 0.0
    %393 = vmatpush1.msra.mxu0 0.0
    %394 = vmatprep.mubr.f32.mxu0 0.0
    %395 = vmatmul.mubr.f32.gmra.mrb[0].mxu0 %v86
    %v396 = vpop.f32.mrb[0].mxu0
    %v397 = vadd.f32 0.0, %v396
    %v398 = vpop.f32.mrb[0].mxu0
    %v399 = vadd.f32 0.0, %v398
    %400 = vmatprep.mubr.f32.mxu0 0.0
    %401 = vmatmul.mubr.f32.gmra.mrb[0].mxu0 %v89
    %v402 = vpop.f32.mrb[0].mxu0
    %v403 = vadd.f32 0.0, %v402
    %v404 = vpop.f32.mrb[0].mxu0
    %v405 = vadd.f32 0.0, %v404
    %406 = vmatprep.mubr.f32.mxu0 0.0
    %407 = vmatmul.mubr.f32.gmra.mrb[0].mxu0 %v92
    %v408 = vpop.f32.mrb[0].mxu0
    %v409 = vadd.f32 0.0, %v408
    %v410 = vpop.f32.mrb[0].mxu0
    %v411 = vadd.f32 0.0, %v410
    %412 = vmatprep.mubr.f32.mxu0 0.0
    %413 = vmatmul.mubr.f32.gmra.mrb[0].mxu0 %v95
    %v414 = vpop.f32.mrb[0].mxu0
    %v415 = vadd.f32 0.0, %v414
    %v416 = vpop.f32.mrb[0].mxu0
    %v417 = vadd.f32 0.0, %v416
    %418 = vmatprep.mubr.f32.mxu0 0.0
    %419 = vmatmul.mubr.f32.gmra.mrb[0].mxu0 %v98
    %v420 = vpop.f32.mrb[0].mxu0
    %v421 = vadd.f32 0.0, %v420
    %v422 = vpop.f32.mrb[0].mxu0
    %v423 = vadd.f32 0.0, %v422
    %424 = vmatprep.mubr.f32.mxu0 0.0
    %425 = vmatmul.mubr.f32.gmra.mrb[0].mxu0 %v101
    %v426 = vpop.f32.mrb[0].mxu0
    %v427 = vadd.f32 0.0, %v426
    %v428 = vpop.f32.mrb[0].mxu0
    %v429 = vadd.f32 0.0, %v428
    %430 = vmatprep.mubr.f32.mxu0 0.0
    %431 = vmatmul.mubr.f32.gmra.mrb[0].mxu0 %v104
    %v432 = vpop.f32.mrb[0].mxu0
    %v433 = vadd.f32 0.0, %v432
    %v434 = vpop.f32.mrb[0].mxu0
    %v435 = vadd.f32 0.0, %v434
    %436 = vmatprep.mubr.f32.mxu0 0.0
    %437 = vmatmul.mubr.f32.gmra.mrb[0].mxu0 %v107
    %v438 = vpop.f32.mrb[0].mxu0
    %v439 = vadd.f32 0.0, %v438
    %v440 = vpop.f32.mrb[0].mxu0
    %v441 = vadd.f32 0.0, %v440
    %442 = vdwg.mxu0
    %443 = vmatprep.subr.mxu0 0.0
    %444 = vmatpush1.msra.mxu0 %v329
    %445 = vmatprep.subr.mxu0 0.0
    %446 = vmatpush1.msra.mxu0 0.0
    %447 = vmatprep.subr.mxu0 0.0
    %448 = vmatpush1.msra.mxu0 0.0
    %449 = vmatprep.subr.mxu0 0.0
    %450 = vmatpush1.msra.mxu0 0.0
    %451 = vmatprep.subr.mxu0 0.0
    %452 = vmatpush1.msra.mxu0 0.0
    %453 = vmatprep.subr.mxu0 0.0
    %454 = vmatpush1.msra.mxu0 0.0
    %455 = vmatprep.subr.mxu0 0.0
    %456 = vmatpush1.msra.mxu0 0.0
    %457 = vmatprep.subr.mxu0 0.0
    %458 = vmatpush1.msra.mxu0 0.0
    %459 = vmatprep.subr.mxu0 0.0
    %460 = vmatpush1.msra.mxu0 0.0
    %461 = vmatprep.subr.mxu0 0.0
    %462 = vmatpush1.msra.mxu0 0.0
    %463 = vmatprep.subr.mxu0 0.0
    %464 = vmatpush1.msra.mxu0 0.0
    %465 = vmatprep.subr.mxu0 0.0
    %466 = vmatpush1.msra.mxu0 0.0
    %467 = vmatprep.subr.mxu0 0.0
    %468 = vmatpush1.msra.mxu0 0.0
    %469 = vmatprep.subr.mxu0 0.0
    %470 = vmatpush1.msra.mxu0 0.0
    %471 = vmatprep.subr.mxu0 0.0
    %472 = vmatpush1.msra.mxu0 0.0
    %473 = vmatprep.subr.mxu0 0.0
    %474 = vmatpush1.msra.mxu0 0.0
    %475 = vmatprep.subr.mxu0 0.0
    %476 = vmatpush1.msra.mxu0 0.0
    %477 = vmatprep.subr.mxu0 0.0
    %478 = vmatpush1.msra.mxu0 0.0
    %479 = vmatprep.subr.mxu0 0.0
    %480 = vmatpush1.msra.mxu0 0.0
    %481 = vmatprep.subr.mxu0 0.0
    %482 = vmatpush1.msra.mxu0 0.0
    %483 = vmatprep.subr.mxu0 0.0
    %484 = vmatpush1.msra.mxu0 0.0
    %485 = vmatprep.subr.mxu0 0.0
    %486 = vmatpush1.msra.mxu0 0.0
    %487 = vmatprep.subr.mxu0 0.0
    %488 = vmatpush1.msra.mxu0 0.0
    %489 = vmatprep.subr.mxu0 0.0
    %490 = vmatpush1.msra.mxu0 0.0
    %491 = vmatprep.subr.mxu0 0.0
    %492 = vmatpush1.msra.mxu0 0.0
    %493 = vmatprep.subr.mxu0 0.0
    %494 = vmatpush1.msra.mxu0 0.0
    %495 = vmatprep.subr.mxu0 0.0
    %496 = vmatpush1.msra.mxu0 0.0
    %497 = vmatprep.subr.mxu0 0.0
    %498 = vmatpush1.msra.mxu0 0.0
    %499 = vmatprep.subr.mxu0 0.0
    %500 = vmatpush1.msra.mxu0 0.0
    %501 = vmatprep.subr.mxu0 0.0
    %502 = vmatpush1.msra.mxu0 0.0
    %503 = vmatprep.subr.mxu0 0.0
    %504 = vmatpush1.msra.mxu0 0.0
    %505 = vmatprep.subr.mxu0 0.0
    %506 = vmatpush1.msra.mxu0 0.0
    %507 = vmatprep.mubr.f32.mxu0 0.0
    %508 = vmatmul.mubr.f32.gmra.mrb[0].mxu0 %v86
    %v509 = vpop.f32.mrb[0].mxu0
    %v510 = vadd.f32 0.0, %v509
    %v511 = vpop.f32.mrb[0].mxu0
    %512 = vmatprep.mubr.f32.mxu0 0.0
    %513 = vmatmul.mubr.f32.gmra.mrb[0].mxu0 %v89
    %v514 = vpop.f32.mrb[0].mxu0
    %v515 = vadd.f32 0.0, %v514
    %v516 = vpop.f32.mrb[0].mxu0
    %517 = vmatprep.mubr.f32.mxu0 0.0
    %518 = vmatmul.mubr.f32.gmra.mrb[0].mxu0 %v92
    %v519 = vpop.f32.mrb[0].mxu0
    %v520 = vadd.f32 0.0, %v519
    %v521 = vpop.f32.mrb[0].mxu0
    %522 = vmatprep.mubr.f32.mxu0 0.0
    %523 = vmatmul.mubr.f32.gmra.mrb[0].mxu0 %v95
    %v524 = vpop.f32.mrb[0].mxu0
    %v525 = vadd.f32 0.0, %v524
    %v526 = vpop.f32.mrb[0].mxu0
    %527 = vmatprep.mubr.f32.mxu0 0.0
    %528 = vmatmul.mubr.f32.gmra.mrb[0].mxu0 %v98
    %v529 = vpop.f32.mrb[0].mxu0
    %v530 = vadd.f32 0.0, %v529
    %v531 = vpop.f32.mrb[0].mxu0
    %532 = vmatprep.mubr.f32.mxu0 0.0
    %533 = vmatmul.mubr.f32.gmra.mrb[0].mxu0 %v101
    %v534 = vpop.f32.mrb[0].mxu0
    %v535 = vadd.f32 0.0, %v534
    %v536 = vpop.f32.mrb[0].mxu0
    %537 = vmatprep.mubr.f32.mxu0 0.0
    %538 = vmatmul.mubr.f32.gmra.mrb[0].mxu0 %v104
    %v539 = vpop.f32.mrb[0].mxu0
    %v540 = vadd.f32 0.0, %v539
    %v541 = vpop.f32.mrb[0].mxu0
    %542 = vmatprep.mubr.f32.mxu0 0.0
    %543 = vmatmul.mubr.f32.gmra.mrb[0].mxu0 %v107
    %v544 = vpop.f32.mrb[0].mxu0
    %v545 = vadd.f32 0.0, %v544
    %v546 = vpop.f32.mrb[0].mxu0
    %547 = vdwg.mxu0
    %v548 = vld [vmem:[%s4] sm:$0xff]
    %v549 = vld [vmem:[%s4 + $0x8] sm:$0xff]
    %v550 = vld [vmem:[%s4 + $0x10] sm:$0xff]
    %v551 = vld [vmem:[%s4 + $0x18] sm:$0xff]
    %v552 = vld [vmem:[%s4 + $0x20] sm:$0xff]
    %v553 = vld [vmem:[%s4 + $0x28] sm:$0xff]
    %v554 = vld [vmem:[%s4 + $0x30] sm:$0xff]
    %v555 = vld [vmem:[%s4 + $0x38] sm:$0xff]
    %v556 = vld [vmem:[%s4 + $0x40] sm:$0xff]
    %v557 = vld [vmem:[%s4 + $0x48] sm:$0xff]
    %v558 = vld [vmem:[%s4 + $0x50] sm:$0xff]
    %v559 = vld [vmem:[%s4 + $0x58] sm:$0xff]
    %v560 = vld [vmem:[%s4 + $0x60] sm:$0xff]
    %v561 = vld [vmem:[%s4 + $0x68] sm:$0xff]
    %v562 = vld [vmem:[%s4 + $0x70] sm:$0xff]
    %v563 = vld [vmem:[%s4 + $0x78] sm:$0xff]
    %v564 = vld [vmem:[%s4 + $0x80] sm:$0xff]
    %v565 = vld [vmem:[%s4 + $0x88] sm:$0xff]
    %v566 = vld [vmem:[%s4 + $0x90] sm:$0xff]
    %v567 = vld [vmem:[%s4 + $0x98] sm:$0xff]
    %v568 = vld [vmem:[%s4 + $0xa0] sm:$0xff]
    %v569 = vld [vmem:[%s4 + $0xa8] sm:$0xff]
    %v570 = vld [vmem:[%s4 + $0xb0] sm:$0xff]
    %v571 = vld [vmem:[%s4 + $0xb8] sm:$0xff]
    %v572 = vld [vmem:[%s4 + $0xc0] sm:$0xff]
    %v573 = vld [vmem:[%s4 + $0xc8] sm:$0xff]
    %v574 = vld [vmem:[%s4 + $0xd0] sm:$0xff]
    %v575 = vld [vmem:[%s4 + $0xd8] sm:$0xff]
    %v576 = vld [vmem:[%s4 + $0xe0] sm:$0xff]
    %v577 = vld [vmem:[%s4 + $0xe8] sm:$0xff]
    %v578 = vld [vmem:[%s4 + $0xf0] sm:$0xff]
    %v579 = vld [vmem:[%s4 + $0xf8] sm:$0xff]
    %v580 = vld [vmem:[%s4 + $0x100] sm:$0xff]
    %v581 = vld [vmem:[%s4 + $0x108] sm:$0xff]
    %v582 = vld [vmem:[%s4 + $0x110] sm:$0xff]
    %v583 = vld [vmem:[%s4 + $0x118] sm:$0xff]
    %v584 = vld [vmem:[%s4 + $0x120] sm:$0xff]
    %v585 = vld [vmem:[%s4 + $0x128] sm:$0xff]
    %v586 = vld [vmem:[%s4 + $0x130] sm:$0xff]
    %v587 = vld [vmem:[%s4 + $0x138] sm:$0xff]
    %v588 = vld [vmem:[%s4 + $0x140] sm:$0xff]
    %v589 = vld [vmem:[%s4 + $0x148] sm:$0xff]
    %v590 = vld [vmem:[%s4 + $0x150] sm:$0xff]
    %v591 = vld [vmem:[%s4 + $0x158] sm:$0xff]
    %v592 = vld [vmem:[%s4 + $0x160] sm:$0xff]
    %v593 = vld [vmem:[%s4 + $0x168] sm:$0xff]
    %v594 = vld [vmem:[%s4 + $0x170] sm:$0xff]
    %v595 = vld [vmem:[%s4 + $0x178] sm:$0xff]
    %v596 = vld [vmem:[%s5] sm:$0x1]
    %v598 = vlaneseq
    %v599 = vshrl.u32 %v598, 7
    %v600 = vsub.s32 0, %v599
    %v601 = vrot.slane %v596, %v600
    %v603 = vadd.f32 %v176, %v439
    %v604 = vadd.f32 %v178, %v441
    %v605 = vadd.f32 %v289, %v545
    %606 = vmatprep.subr.mxu0 %v549
    %607 = vmatpush1.msra.mxu0 %v548
    %608 = vmatprep.subr.mxu0 %v552
    %609 = vmatpush1.msra.mxu0 %v551
    %610 = vmatprep.subr.mxu0 %v555
    %611 = vmatpush1.msra.mxu0 %v554
    %612 = vmatprep.subr.mxu0 %v558
    %613 = vmatpush1.msra.mxu0 %v557
    %614 = vmatprep.subr.mxu0 %v561
    %615 = vmatpush1.msra.mxu0 %v560
    %616 = vmatprep.subr.mxu0 %v564
    %617 = vmatpush1.msra.mxu0 %v563
    %618 = vmatprep.subr.mxu0 %v567
    %619 = vmatpush1.msra.mxu0 %v566
    %620 = vmatprep.subr.mxu0 %v570
    %621 = vmatpush1.msra.mxu0 %v569
    %622 = vmatprep.subr.mxu0 %v573
    %623 = vmatpush1.msra.mxu0 %v572
    %624 = vmatprep.subr.mxu0 %v576
    %625 = vmatpush1.msra.mxu0 %v575
    %626 = vmatprep.subr.mxu0 %v579
    %627 = vmatpush1.msra.mxu0 %v578
    %628 = vmatprep.subr.mxu0 %v582
    %629 = vmatpush1.msra.mxu0 %v581
    %630 = vmatprep.subr.mxu0 %v585
    %631 = vmatpush1.msra.mxu0 %v584
    %632 = vmatprep.subr.mxu0 %v588
    %633 = vmatpush1.msra.mxu0 %v587
    %634 = vmatprep.subr.mxu0 %v591
    %635 = vmatpush1.msra.mxu0 %v590
    %636 = vmatprep.subr.mxu0 %v594
    %637 = vmatpush1.msra.mxu0 %v593
    %638 = vmatprep.subr.mxu0 0.0
    %639 = vmatpush1.msra.mxu0 0.0
    %640 = vmatprep.subr.mxu0 0.0
    %641 = vmatpush1.msra.mxu0 0.0
    %642 = vmatprep.subr.mxu0 0.0
    %643 = vmatpush1.msra.mxu0 0.0
    %644 = vmatprep.subr.mxu0 0.0
    %645 = vmatpush1.msra.mxu0 0.0
    %646 = vmatprep.subr.mxu0 0.0
    %647 = vmatpush1.msra.mxu0 0.0
    %648 = vmatprep.subr.mxu0 0.0
    %649 = vmatpush1.msra.mxu0 0.0
    %650 = vmatprep.subr.mxu0 0.0
    %651 = vmatpush1.msra.mxu0 0.0
    %652 = vmatprep.subr.mxu0 0.0
    %653 = vmatpush1.msra.mxu0 0.0
    %654 = vmatprep.subr.mxu0 0.0
    %655 = vmatpush1.msra.mxu0 0.0
    %656 = vmatprep.subr.mxu0 0.0
    %657 = vmatpush1.msra.mxu0 0.0
    %658 = vmatprep.subr.mxu0 0.0
    %659 = vmatpush1.msra.mxu0 0.0
    %660 = vmatprep.subr.mxu0 0.0
    %661 = vmatpush1.msra.mxu0 0.0
    %662 = vmatprep.subr.mxu0 0.0
    %663 = vmatpush1.msra.mxu0 0.0
    %664 = vmatprep.subr.mxu0 0.0
    %665 = vmatpush1.msra.mxu0 0.0
    %666 = vmatprep.subr.mxu0 0.0
    %667 = vmatpush1.msra.mxu0 0.0
    %668 = vmatprep.subr.mxu0 0.0
    %669 = vmatpush1.msra.mxu0 0.0
    %670 = vmatprep.mubr.f32.mxu0 0.0
    %671 = vmatmul.mubr.f32.gmra.mrb[0].mxu0 0.0
    %v672 = vpop.f32.mrb[0].mxu0
    %v673 = vadd.f32 0.0, %v672
    %v674 = vpop.f32.mrb[0].mxu0
    %v675 = vadd.f32 0.0, %v674
    %676 = vdwg.mxu0
    %677 = vmatprep.subr.mxu0 0.0
    %678 = vmatpush1.msra.mxu0 %v550
    %679 = vmatprep.subr.mxu0 0.0
    %680 = vmatpush1.msra.mxu0 %v553
    %681 = vmatprep.subr.mxu0 0.0
    %682 = vmatpush1.msra.mxu0 %v556
    %683 = vmatprep.subr.mxu0 0.0
    %684 = vmatpush1.msra.mxu0 %v559
    %685 = vmatprep.subr.mxu0 0.0
    %686 = vmatpush1.msra.mxu0 %v562
    %687 = vmatprep.subr.mxu0 0.0
    %688 = vmatpush1.msra.mxu0 %v565
    %689 = vmatprep.subr.mxu0 0.0
    %690 = vmatpush1.msra.mxu0 %v568
    %691 = vmatprep.subr.mxu0 0.0
    %692 = vmatpush1.msra.mxu0 %v571
    %693 = vmatprep.subr.mxu0 0.0
    %694 = vmatpush1.msra.mxu0 %v574
    %695 = vmatprep.subr.mxu0 0.0
    %696 = vmatpush1.msra.mxu0 %v577
    %697 = vmatprep.subr.mxu0 0.0
    %698 = vmatpush1.msra.mxu0 %v580
    %699 = vmatprep.subr.mxu0 0.0
    %700 = vmatpush1.msra.mxu0 %v583
    %701 = vmatprep.subr.mxu0 0.0
    %702 = vmatpush1.msra.mxu0 %v586
    %703 = vmatprep.subr.mxu0 0.0
    %704 = vmatpush1.msra.mxu0 %v589
    %705 = vmatprep.subr.mxu0 0.0
    %706 = vmatpush1.msra.mxu0 %v592
    %707 = vmatprep.subr.mxu0 0.0
    %708 = vmatpush1.msra.mxu0 %v595
    %709 = vmatprep.subr.mxu0 0.0
    %710 = vmatpush1.msra.mxu0 0.0
    %711 = vmatprep.subr.mxu0 0.0
    %712 = vmatpush1.msra.mxu0 0.0
    %713 = vmatprep.subr.mxu0 0.0
    %714 = vmatpush1.msra.mxu0 0.0
    %715 = vmatprep.subr.mxu0 0.0
    %716 = vmatpush1.msra.mxu0 0.0
    %717 = vmatprep.subr.mxu0 0.0
    %718 = vmatpush1.msra.mxu0 0.0
    %719 = vmatprep.subr.mxu0 0.0
    %720 = vmatpush1.msra.mxu0 0.0
    %721 = vmatprep.subr.mxu0 0.0
    %722 = vmatpush1.msra.mxu0 0.0
    %723 = vmatprep.subr.mxu0 0.0
    %724 = vmatpush1.msra.mxu0 0.0
    %725 = vmatprep.subr.mxu0 0.0
    %726 = vmatpush1.msra.mxu0 0.0
    %727 = vmatprep.subr.mxu0 0.0
    %728 = vmatpush1.msra.mxu0 0.0
    %729 = vmatprep.subr.mxu0 0.0
    %730 = vmatpush1.msra.mxu0 0.0
    %731 = vmatprep.subr.mxu0 0.0
    %732 = vmatpush1.msra.mxu0 0.0
    %733 = vmatprep.subr.mxu0 0.0
    %734 = vmatpush1.msra.mxu0 0.0
    %735 = vmatprep.subr.mxu0 0.0
    %736 = vmatpush1.msra.mxu0 0.0
    %737 = vmatprep.subr.mxu0 0.0
    %738 = vmatpush1.msra.mxu0 0.0
    %739 = vmatprep.subr.mxu0 0.0
    %740 = vmatpush1.msra.mxu0 0.0
    %741 = vmatprep.mubr.f32.mxu0 0.0
    %742 = vmatmul.mubr.f32.gmra.mrb[0].mxu0 0.0
    %v743 = vpop.f32.mrb[0].mxu0
    %v744 = vadd.f32 0.0, %v743
    %v745 = vpop.f32.mrb[0].mxu0
    %746 = vdwg.mxu0
    %v747 = vadd.f32 %v603, %v673
    %v748 = vxor.u32 %v747, 2147483648
    %v749 = vmul.f32 %v748, 1.442695
    %v750 = vpow.pop %v749
    %v751 = vadd.f32 %v750, 1.0
    %v752 = vrcp.pop %v751
    %v753 = vmul.f32 1.0, %v752
    %v754 = vadd.f32 %v604, %v675
    %v755 = vxor.u32 %v754, 2147483648
    %v756 = vmul.f32 %v755, 1.442695
    %v757 = vpow.pop %v756
    %v758 = vadd.f32 %v757, 1.0
    %v759 = vrcp.pop %v758
    %v760 = vmul.f32 1.0, %v759
    %v761 = vadd.f32 %v744, %v601
    %v762 = vmul.f32 %v753, %v761
    %v763 = vadd.f32 %v605, %v762
    %v764 = vtanh.pop %v763
    %v765 = vsub.f32 1.0, %v760
    %v766 = vmul.f32 %v765, %v764
    %v767 = vmul.f32 %v760, 0.0
    %v768 = vadd.f32 %v766, %v767
    %769 = vst [vmem:[#allocation2] sm:$0xff] %v768
    %770 = vst [vmem:[#allocation3 + $0x38] sm:$0xff] %v768
    %v771 = vadd.f32 %v182, %v433
    %v772 = vadd.f32 %v184, %v435
    %v773 = vadd.f32 %v294, %v540
    %774 = vmatprep.subr.mxu0 %v549
    %775 = vmatpush1.msra.mxu0 %v548
    %776 = vmatprep.subr.mxu0 %v552
    %777 = vmatpush1.msra.mxu0 %v551
    %778 = vmatprep.subr.mxu0 %v555
    %779 = vmatpush1.msra.mxu0 %v554
    %780 = vmatprep.subr.mxu0 %v558
    %781 = vmatpush1.msra.mxu0 %v557
    %782 = vmatprep.subr.mxu0 %v561
    %783 = vmatpush1.msra.mxu0 %v560
    %784 = vmatprep.subr.mxu0 %v564
    %785 = vmatpush1.msra.mxu0 %v563
    %786 = vmatprep.subr.mxu0 %v567
    %787 = vmatpush1.msra.mxu0 %v566
    %788 = vmatprep.subr.mxu0 %v570
    %789 = vmatpush1.msra.mxu0 %v569
    %790 = vmatprep.subr.mxu0 %v573
    %791 = vmatpush1.msra.mxu0 %v572
    %792 = vmatprep.subr.mxu0 %v576
    %793 = vmatpush1.msra.mxu0 %v575
    %794 = vmatprep.subr.mxu0 %v579
    %795 = vmatpush1.msra.mxu0 %v578
    %796 = vmatprep.subr.mxu0 %v582
    %797 = vmatpush1.msra.mxu0 %v581
    %798 = vmatprep.subr.mxu0 %v585
    %799 = vmatpush1.msra.mxu0 %v584
    %800 = vmatprep.subr.mxu0 %v588
    %801 = vmatpush1.msra.mxu0 %v587
    %802 = vmatprep.subr.mxu0 %v591
    %803 = vmatpush1.msra.mxu0 %v590
    %804 = vmatprep.subr.mxu0 %v594
    %805 = vmatpush1.msra.mxu0 %v593
    %806 = vmatprep.subr.mxu0 0.0
    %807 = vmatpush1.msra.mxu0 0.0
    %808 = vmatprep.subr.mxu0 0.0
    %809 = vmatpush1.msra.mxu0 0.0
    %810 = vmatprep.subr.mxu0 0.0
    %811 = vmatpush1.msra.mxu0 0.0
    %812 = vmatprep.subr.mxu0 0.0
    %813 = vmatpush1.msra.mxu0 0.0
    %814 = vmatprep.subr.mxu0 0.0
    %815 = vmatpush1.msra.mxu0 0.0
    %816 = vmatprep.subr.mxu0 0.0
    %817 = vmatpush1.msra.mxu0 0.0
    %818 = vmatprep.subr.mxu0 0.0
    %819 = vmatpush1.msra.mxu0 0.0
    %820 = vmatprep.subr.mxu0 0.0
    %821 = vmatpush1.msra.mxu0 0.0
    %822 = vmatprep.subr.mxu0 0.0
    %823 = vmatpush1.msra.mxu0 0.0
    %824 = vmatprep.subr.mxu0 0.0
    %825 = vmatpush1.msra.mxu0 0.0
    %826 = vmatprep.subr.mxu0 0.0
    %827 = vmatpush1.msra.mxu0 0.0
    %828 = vmatprep.subr.mxu0 0.0
    %829 = vmatpush1.msra.mxu0 0.0
    %830 = vmatprep.subr.mxu0 0.0
    %831 = vmatpush1.msra.mxu0 0.0
    %832 = vmatprep.subr.mxu0 0.0
    %833 = vmatpush1.msra.mxu0 0.0
    %834 = vmatprep.subr.mxu0 0.0
    %835 = vmatpush1.msra.mxu0 0.0
    %836 = vmatprep.subr.mxu0 0.0
    %837 = vmatpush1.msra.mxu0 0.0
    %838 = vmatprep.mubr.f32.mxu0 0.0
    %839 = vmatmul.mubr.f32.gmra.mrb[0].mxu0 %v768
    %v840 = vpop.f32.mrb[0].mxu0
    %v841 = vadd.f32 0.0, %v840
    %v842 = vpop.f32.mrb[0].mxu0
    %v843 = vadd.f32 0.0, %v842
    %844 = vdwg.mxu0
    %845 = vmatprep.subr.mxu0 0.0
    %846 = vmatpush1.msra.mxu0 %v550
    %847 = vmatprep.subr.mxu0 0.0
    %848 = vmatpush1.msra.mxu0 %v553
    %849 = vmatprep.subr.mxu0 0.0
    %850 = vmatpush1.msra.mxu0 %v556
    %851 = vmatprep.subr.mxu0 0.0
    %852 = vmatpush1.msra.mxu0 %v559
    %853 = vmatprep.subr.mxu0 0.0
    %854 = vmatpush1.msra.mxu0 %v562
    %855 = vmatprep.subr.mxu0 0.0
    %856 = vmatpush1.msra.mxu0 %v565
    %857 = vmatprep.subr.mxu0 0.0
    %858 = vmatpush1.msra.mxu0 %v568
    %859 = vmatprep.subr.mxu0 0.0
    %860 = vmatpush1.msra.mxu0 %v571
    %861 = vmatprep.subr.mxu0 0.0
    %862 = vmatpush1.msra.mxu0 %v574
    %863 = vmatprep.subr.mxu0 0.0
    %864 = vmatpush1.msra.mxu0 %v577
    %865 = vmatprep.subr.mxu0 0.0
    %866 = vmatpush1.msra.mxu0 %v580
    %867 = vmatprep.subr.mxu0 0.0
    %868 = vmatpush1.msra.mxu0 %v583
    %869 = vmatprep.subr.mxu0 0.0
    %870 = vmatpush1.msra.mxu0 %v586
    %871 = vmatprep.subr.mxu0 0.0
    %872 = vmatpush1.msra.mxu0 %v589
    %873 = vmatprep.subr.mxu0 0.0
    %874 = vmatpush1.msra.mxu0 %v592
    %875 = vmatprep.subr.mxu0 0.0
    %876 = vmatpush1.msra.mxu0 %v595
    %877 = vmatprep.subr.mxu0 0.0
    %878 = vmatpush1.msra.mxu0 0.0
    %879 = vmatprep.subr.mxu0 0.0
    %880 = vmatpush1.msra.mxu0 0.0
    %881 = vmatprep.subr.mxu0 0.0
    %882 = vmatpush1.msra.mxu0 0.0
    %883 = vmatprep.subr.mxu0 0.0
    %884 = vmatpush1.msra.mxu0 0.0
    %885 = vmatprep.subr.mxu0 0.0
    %886 = vmatpush1.msra.mxu0 0.0
    %887 = vmatprep.subr.mxu0 0.0
    %888 = vmatpush1.msra.mxu0 0.0
    %889 = vmatprep.subr.mxu0 0.0
    %890 = vmatpush1.msra.mxu0 0.0
    %891 = vmatprep.subr.mxu0 0.0
    %892 = vmatpush1.msra.mxu0 0.0
    %893 = vmatprep.subr.mxu0 0.0
    %894 = vmatpush1.msra.mxu0 0.0
    %895 = vmatprep.subr.mxu0 0.0
    %896 = vmatpush1.msra.mxu0 0.0
    %897 = vmatprep.subr.mxu0 0.0
    %898 = vmatpush1.msra.mxu0 0.0
    %899 = vmatprep.subr.mxu0 0.0
    %900 = vmatpush1.msra.mxu0 0.0
    %901 = vmatprep.subr.mxu0 0.0
    %902 = vmatpush1.msra.mxu0 0.0
    %903 = vmatprep.subr.mxu0 0.0
    %904 = vmatpush1.msra.mxu0 0.0
    %905 = vmatprep.subr.mxu0 0.0
    %906 = vmatpush1.msra.mxu0 0.0
    %907 = vmatprep.subr.mxu0 0.0
    %908 = vmatpush1.msra.mxu0 0.0
    %909 = vmatprep.mubr.f32.mxu0 0.0
    %910 = vmatmul.mubr.f32.gmra.mrb[0].mxu0 %v768
    %v911 = vpop.f32.mrb[0].mxu0
    %v912 = vadd.f32 0.0, %v911
    %v913 = vpop.f32.mrb[0].mxu0
    %914 = vdwg.mxu0
    %v915 = vadd.f32 %v771, %v841
    %v916 = vxor.u32 %v915, 2147483648
    %v917 = vmul.f32 %v916, 1.442695
    %v918 = vpow.pop %v917
    %v919 = vadd.f32 %v918, 1.0
    %v920 = vrcp.pop %v919
    %v921 = vmul.f32 1.0, %v920
    %v922 = vadd.f32 %v772, %v843
    %v923 = vxor.u32 %v922, 2147483648
    %v924 = vmul.f32 %v923, 1.442695
    %v925 = vpow.pop %v924
    %v926 = vadd.f32 %v925, 1.0
    %v927 = vrcp.pop %v926
    %v928 = vmul.f32 1.0, %v927
    %v929 = vadd.f32 %v912, %v601
    %v930 = vmul.f32 %v921, %v929
    %v931 = vadd.f32 %v773, %v930
    %v932 = vtanh.pop %v931
    %v933 = vsub.f32 1.0, %v928
    %v934 = vmul.f32 %v933, %v932
    %v935 = vmul.f32 %v928, %v768
    %v936 = vadd.f32 %v934, %v935
    %937 = vst [vmem:[#allocation2 + $0x8] sm:$0xff] %v936
    %938 = vst [vmem:[#allocation3 + $0x30] sm:$0xff] %v936
    %v939 = vadd.f32 %v188, %v427
    %v940 = vadd.f32 %v190, %v429
    %v941 = vadd.f32 %v299, %v535
    %942 = vmatprep.subr.mxu0 %v549
    %943 = vmatpush1.msra.mxu0 %v548
    %944 = vmatprep.subr.mxu0 %v552
    %945 = vmatpush1.msra.mxu0 %v551
    %946 = vmatprep.subr.mxu0 %v555
    %947 = vmatpush1.msra.mxu0 %v554
    %948 = vmatprep.subr.mxu0 %v558
    %949 = vmatpush1.msra.mxu0 %v557
    %950 = vmatprep.subr.mxu0 %v561
    %951 = vmatpush1.msra.mxu0 %v560
    %952 = vmatprep.subr.mxu0 %v564
    %953 = vmatpush1.msra.mxu0 %v563
    %954 = vmatprep.subr.mxu0 %v567
    %955 = vmatpush1.msra.mxu0 %v566
    %956 = vmatprep.subr.mxu0 %v570
    %957 = vmatpush1.msra.mxu0 %v569
    %958 = vmatprep.subr.mxu0 %v573
    %959 = vmatpush1.msra.mxu0 %v572
    %960 = vmatprep.subr.mxu0 %v576
    %961 = vmatpush1.msra.mxu0 %v575
    %962 = vmatprep.subr.mxu0 %v579
    %963 = vmatpush1.msra.mxu0 %v578
    %964 = vmatprep.subr.mxu0 %v582
    %965 = vmatpush1.msra.mxu0 %v581
    %966 = vmatprep.subr.mxu0 %v585
    %967 = vmatpush1.msra.mxu0 %v584
    %968 = vmatprep.subr.mxu0 %v588
    %969 = vmatpush1.msra.mxu0 %v587
    %970 = vmatprep.subr.mxu0 %v591
    %971 = vmatpush1.msra.mxu0 %v590
    %972 = vmatprep.subr.mxu0 %v594
    %973 = vmatpush1.msra.mxu0 %v593
    %974 = vmatprep.subr.mxu0 0.0
    %975 = vmatpush1.msra.mxu0 0.0
    %976 = vmatprep.subr.mxu0 0.0
    %977 = vmatpush1.msra.mxu0 0.0
    %978 = vmatprep.subr.mxu0 0.0
    %979 = vmatpush1.msra.mxu0 0.0
    %980 = vmatprep.subr.mxu0 0.0
    %981 = vmatpush1.msra.mxu0 0.0
    %982 = vmatprep.subr.mxu0 0.0
    %983 = vmatpush1.msra.mxu0 0.0
    %984 = vmatprep.subr.mxu0 0.0
    %985 = vmatpush1.msra.mxu0 0.0
    %986 = vmatprep.subr.mxu0 0.0
    %987 = vmatpush1.msra.mxu0 0.0
    %988 = vmatprep.subr.mxu0 0.0
    %989 = vmatpush1.msra.mxu0 0.0
    %990 = vmatprep.subr.mxu0 0.0
    %991 = vmatpush1.msra.mxu0 0.0
    %992 = vmatprep.subr.mxu0 0.0
    %993 = vmatpush1.msra.mxu0 0.0
    %994 = vmatprep.subr.mxu0 0.0
    %995 = vmatpush1.msra.mxu0 0.0
    %996 = vmatprep.subr.mxu0 0.0
    %997 = vmatpush1.msra.mxu0 0.0
    %998 = vmatprep.subr.mxu0 0.0
    %999 = vmatpush1.msra.mxu0 0.0
    %1000 = vmatprep.subr.mxu0 0.0
    %1001 = vmatpush1.msra.mxu0 0.0
    %1002 = vmatprep.subr.mxu0 0.0
    %1003 = vmatpush1.msra.mxu0 0.0
    %1004 = vmatprep.subr.mxu0 0.0
    %1005 = vmatpush1.msra.mxu0 0.0
    %1006 = vmatprep.mubr.f32.mxu0 0.0
    %1007 = vmatmul.mubr.f32.gmra.mrb[0].mxu0 %v936
    %v1008 = vpop.f32.mrb[0].mxu0
    %v1009 = vadd.f32 0.0, %v1008
    %v1010 = vpop.f32.mrb[0].mxu0
    %v1011 = vadd.f32 0.0, %v1010
    %1012 = vdwg.mxu0
    %1013 = vmatprep.subr.mxu0 0.0
    %1014 = vmatpush1.msra.mxu0 %v550
    %1015 = vmatprep.subr.mxu0 0.0
    %1016 = vmatpush1.msra.mxu0 %v553
    %1017 = vmatprep.subr.mxu0 0.0
    %1018 = vmatpush1.msra.mxu0 %v556
    %1019 = vmatprep.subr.mxu0 0.0
    %1020 = vmatpush1.msra.mxu0 %v559
    %1021 = vmatprep.subr.mxu0 0.0
    %1022 = vmatpush1.msra.mxu0 %v562
    %1023 = vmatprep.subr.mxu0 0.0
    %1024 = vmatpush1.msra.mxu0 %v565
    %1025 = vmatprep.subr.mxu0 0.0
    %1026 = vmatpush1.msra.mxu0 %v568
    %1027 = vmatprep.subr.mxu0 0.0
    %1028 = vmatpush1.msra.mxu0 %v571
    %1029 = vmatprep.subr.mxu0 0.0
    %1030 = vmatpush1.msra.mxu0 %v574
    %1031 = vmatprep.subr.mxu0 0.0
    %1032 = vmatpush1.msra.mxu0 %v577
    %1033 = vmatprep.subr.mxu0 0.0
    %1034 = vmatpush1.msra.mxu0 %v580
    %1035 = vmatprep.subr.mxu0 0.0
    %1036 = vmatpush1.msra.mxu0 %v583
    %1037 = vmatprep.subr.mxu0 0.0
    %1038 = vmatpush1.msra.mxu0 %v586
    %1039 = vmatprep.subr.mxu0 0.0
    %1040 = vmatpush1.msra.mxu0 %v589
    %1041 = vmatprep.subr.mxu0 0.0
    %1042 = vmatpush1.msra.mxu0 %v592
    %1043 = vmatprep.subr.mxu0 0.0
    %1044 = vmatpush1.msra.mxu0 %v595
    %1045 = vmatprep.subr.mxu0 0.0
    %1046 = vmatpush1.msra.mxu0 0.0
    %1047 = vmatprep.subr.mxu0 0.0
    %1048 = vmatpush1.msra.mxu0 0.0
    %1049 = vmatprep.subr.mxu0 0.0
    %1050 = vmatpush1.msra.mxu0 0.0
    %1051 = vmatprep.subr.mxu0 0.0
    %1052 = vmatpush1.msra.mxu0 0.0
    %1053 = vmatprep.subr.mxu0 0.0
    %1054 = vmatpush1.msra.mxu0 0.0
    %1055 = vmatprep.subr.mxu0 0.0
    %1056 = vmatpush1.msra.mxu0 0.0
    %1057 = vmatprep.subr.mxu0 0.0
    %1058 = vmatpush1.msra.mxu0 0.0
    %1059 = vmatprep.subr.mxu0 0.0
    %1060 = vmatpush1.msra.mxu0 0.0
    %1061 = vmatprep.subr.mxu0 0.0
    %1062 = vmatpush1.msra.mxu0 0.0
    %1063 = vmatprep.subr.mxu0 0.0
    %1064 = vmatpush1.msra.mxu0 0.0
    %1065 = vmatprep.subr.mxu0 0.0
    %1066 = vmatpush1.msra.mxu0 0.0
    %1067 = vmatprep.subr.mxu0 0.0
    %1068 = vmatpush1.msra.mxu0 0.0
    %1069 = vmatprep.subr.mxu0 0.0
    %1070 = vmatpush1.msra.mxu0 0.0
    %1071 = vmatprep.subr.mxu0 0.0
    %1072 = vmatpush1.msra.mxu0 0.0
    %1073 = vmatprep.subr.mxu0 0.0
    %1074 = vmatpush1.msra.mxu0 0.0
    %1075 = vmatprep.subr.mxu0 0.0
    %1076 = vmatpush1.msra.mxu0 0.0
    %1077 = vmatprep.mubr.f32.mxu0 0.0
    %1078 = vmatmul.mubr.f32.gmra.mrb[0].mxu0 %v936
    %v1079 = vpop.f32.mrb[0].mxu0
    %v1080 = vadd.f32 0.0, %v1079
    %v1081 = vpop.f32.mrb[0].mxu0
    %1082 = vdwg.mxu0
    %v1083 = vadd.f32 %v939, %v1009
    %v1084 = vxor.u32 %v1083, 2147483648
    %v1085 = vmul.f32 %v1084, 1.442695
    %v1086 = vpow.pop %v1085
    %v1087 = vadd.f32 %v1086, 1.0
    %v1088 = vrcp.pop %v1087
    %v1089 = vmul.f32 1.0, %v1088
    %v1090 = vadd.f32 %v940, %v1011
    %v1091 = vxor.u32 %v1090, 2147483648
    %v1092 = vmul.f32 %v1091, 1.442695
    %v1093 = vpow.pop %v1092
    %v1094 = vadd.f32 %v1093, 1.0
    %v1095 = vrcp.pop %v1094
    %v1096 = vmul.f32 1.0, %v1095
    %v1097 = vadd.f32 %v1080, %v601
    %v1098 = vmul.f32 %v1089, %v1097
    %v1099 = vadd.f32 %v941, %v1098
    %v1100 = vtanh.pop %v1099
    %v1101 = vsub.f32 1.0, %v1096
    %v1102 = vmul.f32 %v1101, %v1100
    %v1103 = vmul.f32 %v1096, %v936
    %v1104 = vadd.f32 %v1102, %v1103
    %1105 = vst [vmem:[#allocation2 + $0x10] sm:$0xff] %v1104
    %1106 = vst [vmem:[#allocation3 + $0x28] sm:$0xff] %v1104
    %v1107 = vadd.f32 %v194, %v421
    %v1108 = vadd.f32 %v196, %v423
    %v1109 = vadd.f32 %v304, %v530
    %1110 = vmatprep.subr.mxu0 %v549
    %1111 = vmatpush1.msra.mxu0 %v548
    %1112 = vmatprep.subr.mxu0 %v552
    %1113 = vmatpush1.msra.mxu0 %v551
    %1114 = vmatprep.subr.mxu0 %v555
    %1115 = vmatpush1.msra.mxu0 %v554
    %1116 = vmatprep.subr.mxu0 %v558
    %1117 = vmatpush1.msra.mxu0 %v557
    %1118 = vmatprep.subr.mxu0 %v561
    %1119 = vmatpush1.msra.mxu0 %v560
    %1120 = vmatprep.subr.mxu0 %v564
    %1121 = vmatpush1.msra.mxu0 %v563
    %1122 = vmatprep.subr.mxu0 %v567
    %1123 = vmatpush1.msra.mxu0 %v566
    %1124 = vmatprep.subr.mxu0 %v570
    %1125 = vmatpush1.msra.mxu0 %v569
    %1126 = vmatprep.subr.mxu0 %v573
    %1127 = vmatpush1.msra.mxu0 %v572
    %1128 = vmatprep.subr.mxu0 %v576
    %1129 = vmatpush1.msra.mxu0 %v575
    %1130 = vmatprep.subr.mxu0 %v579
    %1131 = vmatpush1.msra.mxu0 %v578
    %1132 = vmatprep.subr.mxu0 %v582
    %1133 = vmatpush1.msra.mxu0 %v581
    %1134 = vmatprep.subr.mxu0 %v585
    %1135 = vmatpush1.msra.mxu0 %v584
    %1136 = vmatprep.subr.mxu0 %v588
    %1137 = vmatpush1.msra.mxu0 %v587
    %1138 = vmatprep.subr.mxu0 %v591
    %1139 = vmatpush1.msra.mxu0 %v590
    %1140 = vmatprep.subr.mxu0 %v594
    %1141 = vmatpush1.msra.mxu0 %v593
    %1142 = vmatprep.subr.mxu0 0.0
    %1143 = vmatpush1.msra.mxu0 0.0
    %1144 = vmatprep.subr.mxu0 0.0
    %1145 = vmatpush1.msra.mxu0 0.0
    %1146 = vmatprep.subr.mxu0 0.0
    %1147 = vmatpush1.msra.mxu0 0.0
    %1148 = vmatprep.subr.mxu0 0.0
    %1149 = vmatpush1.msra.mxu0 0.0
    %1150 = vmatprep.subr.mxu0 0.0
    %1151 = vmatpush1.msra.mxu0 0.0
    %1152 = vmatprep.subr.mxu0 0.0
    %1153 = vmatpush1.msra.mxu0 0.0
    %1154 = vmatprep.subr.mxu0 0.0
    %1155 = vmatpush1.msra.mxu0 0.0
    %1156 = vmatprep.subr.mxu0 0.0
    %1157 = vmatpush1.msra.mxu0 0.0
    %1158 = vmatprep.subr.mxu0 0.0
    %1159 = vmatpush1.msra.mxu0 0.0
    %1160 = vmatprep.subr.mxu0 0.0
    %1161 = vmatpush1.msra.mxu0 0.0
    %1162 = vmatprep.subr.mxu0 0.0
    %1163 = vmatpush1.msra.mxu0 0.0
    %1164 = vmatprep.subr.mxu0 0.0
    %1165 = vmatpush1.msra.mxu0 0.0
    %1166 = vmatprep.subr.mxu0 0.0
    %1167 = vmatpush1.msra.mxu0 0.0
    %1168 = vmatprep.subr.mxu0 0.0
    %1169 = vmatpush1.msra.mxu0 0.0
    %1170 = vmatprep.subr.mxu0 0.0
    %1171 = vmatpush1.msra.mxu0 0.0
    %1172 = vmatprep.subr.mxu0 0.0
    %1173 = vmatpush1.msra.mxu0 0.0
    %1174 = vmatprep.mubr.f32.mxu0 0.0
    %1175 = vmatmul.mubr.f32.gmra.mrb[0].mxu0 %v1104
    %v1176 = vpop.f32.mrb[0].mxu0
    %v1177 = vadd.f32 0.0, %v1176
    %v1178 = vpop.f32.mrb[0].mxu0
    %v1179 = vadd.f32 0.0, %v1178
    %1180 = vdwg.mxu0
    %1181 = vmatprep.subr.mxu0 0.0
    %1182 = vmatpush1.msra.mxu0 %v550
    %1183 = vmatprep.subr.mxu0 0.0
    %1184 = vmatpush1.msra.mxu0 %v553
    %1185 = vmatprep.subr.mxu0 0.0
    %1186 = vmatpush1.msra.mxu0 %v556
    %1187 = vmatprep.subr.mxu0 0.0
    %1188 = vmatpush1.msra.mxu0 %v559
    %1189 = vmatprep.subr.mxu0 0.0
    %1190 = vmatpush1.msra.mxu0 %v562
    %1191 = vmatprep.subr.mxu0 0.0
    %1192 = vmatpush1.msra.mxu0 %v565
    %1193 = vmatprep.subr.mxu0 0.0
    %1194 = vmatpush1.msra.mxu0 %v568
    %1195 = vmatprep.subr.mxu0 0.0
    %1196 = vmatpush1.msra.mxu0 %v571
    %1197 = vmatprep.subr.mxu0 0.0
    %1198 = vmatpush1.msra.mxu0 %v574
    %1199 = vmatprep.subr.mxu0 0.0
    %1200 = vmatpush1.msra.mxu0 %v577
    %1201 = vmatprep.subr.mxu0 0.0
    %1202 = vmatpush1.msra.mxu0 %v580
    %1203 = vmatprep.subr.mxu0 0.0
    %1204 = vmatpush1.msra.mxu0 %v583
    %1205 = vmatprep.subr.mxu0 0.0
    %1206 = vmatpush1.msra.mxu0 %v586
    %1207 = vmatprep.subr.mxu0 0.0
    %1208 = vmatpush1.msra.mxu0 %v589
    %1209 = vmatprep.subr.mxu0 0.0
    %1210 = vmatpush1.msra.mxu0 %v592
    %1211 = vmatprep.subr.mxu0 0.0
    %1212 = vmatpush1.msra.mxu0 %v595
    %1213 = vmatprep.subr.mxu0 0.0
    %1214 = vmatpush1.msra.mxu0 0.0
    %1215 = vmatprep.subr.mxu0 0.0
    %1216 = vmatpush1.msra.mxu0 0.0
    %1217 = vmatprep.subr.mxu0 0.0
    %1218 = vmatpush1.msra.mxu0 0.0
    %1219 = vmatprep.subr.mxu0 0.0
    %1220 = vmatpush1.msra.mxu0 0.0
    %1221 = vmatprep.subr.mxu0 0.0
    %1222 = vmatpush1.msra.mxu0 0.0
    %1223 = vmatprep.subr.mxu0 0.0
    %1224 = vmatpush1.msra.mxu0 0.0
    %1225 = vmatprep.subr.mxu0 0.0
    %1226 = vmatpush1.msra.mxu0 0.0
    %1227 = vmatprep.subr.mxu0 0.0
    %1228 = vmatpush1.msra.mxu0 0.0
    %1229 = vmatprep.subr.mxu0 0.0
    %1230 = vmatpush1.msra.mxu0 0.0
    %1231 = vmatprep.subr.mxu0 0.0
    %1232 = vmatpush1.msra.mxu0 0.0
    %1233 = vmatprep.subr.mxu0 0.0
    %1234 = vmatpush1.msra.mxu0 0.0
    %1235 = vmatprep.subr.mxu0 0.0
    %1236 = vmatpush1.msra.mxu0 0.0
    %1237 = vmatprep.subr.mxu0 0.0
    %1238 = vmatpush1.msra.mxu0 0.0
    %1239 = vmatprep.subr.mxu0 0.0
    %1240 = vmatpush1.msra.mxu0 0.0
    %1241 = vmatprep.subr.mxu0 0.0
    %1242 = vmatpush1.msra.mxu0 0.0
    %1243 = vmatprep.subr.mxu0 0.0
    %1244 = vmatpush1.msra.mxu0 0.0
    %1245 = vmatprep.mubr.f32.mxu0 0.0
    %1246 = vmatmul.mubr.f32.gmra.mrb[0].mxu0 %v1104
    %v1247 = vpop.f32.mrb[0].mxu0
    %v1248 = vadd.f32 0.0, %v1247
    %v1249 = vpop.f32.mrb[0].mxu0
    %1250 = vdwg.mxu0
    %v1251 = vadd.f32 %v1107, %v1177
    %v1252 = vxor.u32 %v1251, 2147483648
    %v1253 = vmul.f32 %v1252, 1.442695
    %v1254 = vpow.pop %v1253
    %v1255 = vadd.f32 %v1254, 1.0
    %v1256 = vrcp.pop %v1255
    %v1257 = vmul.f32 1.0, %v1256
    %v1258 = vadd.f32 %v1108, %v1179
    %v1259 = vxor.u32 %v1258, 2147483648
    %v1260 = vmul.f32 %v1259, 1.442695
    %v1261 = vpow.pop %v1260
    %v1262 = vadd.f32 %v1261, 1.0
    %v1263 = vrcp.pop %v1262
    %v1264 = vmul.f32 1.0, %v1263
    %v1265 = vadd.f32 %v1248, %v601
    %v1266 = vmul.f32 %v1257, %v1265
    %v1267 = vadd.f32 %v1109, %v1266
    %v1268 = vtanh.pop %v1267
    %v1269 = vsub.f32 1.0, %v1264
    %v1270 = vmul.f32 %v1269, %v1268
    %v1271 = vmul.f32 %v1264, %v1104
    %v1272 = vadd.f32 %v1270, %v1271
    %1273 = vst [vmem:[#allocation2 + $0x18] sm:$0xff] %v1272
    %1274 = vst [vmem:[#allocation3 + $0x20] sm:$0xff] %v1272
    %v1275 = vadd.f32 %v200, %v415
    %v1276 = vadd.f32 %v202, %v417
    %v1277 = vadd.f32 %v309, %v525
    %1278 = vmatprep.subr.mxu0 %v549
    %1279 = vmatpush1.msra.mxu0 %v548
    %1280 = vmatprep.subr.mxu0 %v552
    %1281 = vmatpush1.msra.mxu0 %v551
    %1282 = vmatprep.subr.mxu0 %v555
    %1283 = vmatpush1.msra.mxu0 %v554
    %1284 = vmatprep.subr.mxu0 %v558
    %1285 = vmatpush1.msra.mxu0 %v557
    %1286 = vmatprep.subr.mxu0 %v561
    %1287 = vmatpush1.msra.mxu0 %v560
    %1288 = vmatprep.subr.mxu0 %v564
    %1289 = vmatpush1.msra.mxu0 %v563
    %1290 = vmatprep.subr.mxu0 %v567
    %1291 = vmatpush1.msra.mxu0 %v566
    %1292 = vmatprep.subr.mxu0 %v570
    %1293 = vmatpush1.msra.mxu0 %v569
    %1294 = vmatprep.subr.mxu0 %v573
    %1295 = vmatpush1.msra.mxu0 %v572
    %1296 = vmatprep.subr.mxu0 %v576
    %1297 = vmatpush1.msra.mxu0 %v575
    %1298 = vmatprep.subr.mxu0 %v579
    %1299 = vmatpush1.msra.mxu0 %v578
    %1300 = vmatprep.subr.mxu0 %v582
    %1301 = vmatpush1.msra.mxu0 %v581
    %1302 = vmatprep.subr.mxu0 %v585
    %1303 = vmatpush1.msra.mxu0 %v584
    %1304 = vmatprep.subr.mxu0 %v588
    %1305 = vmatpush1.msra.mxu0 %v587
    %1306 = vmatprep.subr.mxu0 %v591
    %1307 = vmatpush1.msra.mxu0 %v590
    %1308 = vmatprep.subr.mxu0 %v594
    %1309 = vmatpush1.msra.mxu0 %v593
    %1310 = vmatprep.subr.mxu0 0.0
    %1311 = vmatpush1.msra.mxu0 0.0
    %1312 = vmatprep.subr.mxu0 0.0
    %1313 = vmatpush1.msra.mxu0 0.0
    %1314 = vmatprep.subr.mxu0 0.0
    %1315 = vmatpush1.msra.mxu0 0.0
    %1316 = vmatprep.subr.mxu0 0.0
    %1317 = vmatpush1.msra.mxu0 0.0
    %1318 = vmatprep.subr.mxu0 0.0
    %1319 = vmatpush1.msra.mxu0 0.0
    %1320 = vmatprep.subr.mxu0 0.0
    %1321 = vmatpush1.msra.mxu0 0.0
    %1322 = vmatprep.subr.mxu0 0.0
    %1323 = vmatpush1.msra.mxu0 0.0
    %1324 = vmatprep.subr.mxu0 0.0
    %1325 = vmatpush1.msra.mxu0 0.0
    %1326 = vmatprep.subr.mxu0 0.0
    %1327 = vmatpush1.msra.mxu0 0.0
    %1328 = vmatprep.subr.mxu0 0.0
    %1329 = vmatpush1.msra.mxu0 0.0
    %1330 = vmatprep.subr.mxu0 0.0
    %1331 = vmatpush1.msra.mxu0 0.0
    %1332 = vmatprep.subr.mxu0 0.0
    %1333 = vmatpush1.msra.mxu0 0.0
    %1334 = vmatprep.subr.mxu0 0.0
    %1335 = vmatpush1.msra.mxu0 0.0
    %1336 = vmatprep.subr.mxu0 0.0
    %1337 = vmatpush1.msra.mxu0 0.0
    %1338 = vmatprep.subr.mxu0 0.0
    %1339 = vmatpush1.msra.mxu0 0.0
    %1340 = vmatprep.subr.mxu0 0.0
    %1341 = vmatpush1.msra.mxu0 0.0
    %1342 = vmatprep.mubr.f32.mxu0 0.0
    %1343 = vmatmul.mubr.f32.gmra.mrb[0].mxu0 %v1272
    %v1344 = vpop.f32.mrb[0].mxu0
    %v1345 = vadd.f32 0.0, %v1344
    %v1346 = vpop.f32.mrb[0].mxu0
    %v1347 = vadd.f32 0.0, %v1346
    %1348 = vdwg.mxu0
    %1349 = vmatprep.subr.mxu0 0.0
    %1350 = vmatpush1.msra.mxu0 %v550
    %1351 = vmatprep.subr.mxu0 0.0
    %1352 = vmatpush1.msra.mxu0 %v553
    %1353 = vmatprep.subr.mxu0 0.0
    %1354 = vmatpush1.msra.mxu0 %v556
    %1355 = vmatprep.subr.mxu0 0.0
    %1356 = vmatpush1.msra.mxu0 %v559
    %1357 = vmatprep.subr.mxu0 0.0
    %1358 = vmatpush1.msra.mxu0 %v562
    %1359 = vmatprep.subr.mxu0 0.0
    %1360 = vmatpush1.msra.mxu0 %v565
    %1361 = vmatprep.subr.mxu0 0.0
    %1362 = vmatpush1.msra.mxu0 %v568
    %1363 = vmatprep.subr.mxu0 0.0
    %1364 = vmatpush1.msra.mxu0 %v571
    %1365 = vmatprep.subr.mxu0 0.0
    %1366 = vmatpush1.msra.mxu0 %v574
    %1367 = vmatprep.subr.mxu0 0.0
    %1368 = vmatpush1.msra.mxu0 %v577
    %1369 = vmatprep.subr.mxu0 0.0
    %1370 = vmatpush1.msra.mxu0 %v580
    %1371 = vmatprep.subr.mxu0 0.0
    %1372 = vmatpush1.msra.mxu0 %v583
    %1373 = vmatprep.subr.mxu0 0.0
    %1374 = vmatpush1.msra.mxu0 %v586
    %1375 = vmatprep.subr.mxu0 0.0
    %1376 = vmatpush1.msra.mxu0 %v589
    %1377 = vmatprep.subr.mxu0 0.0
    %1378 = vmatpush1.msra.mxu0 %v592
    %1379 = vmatprep.subr.mxu0 0.0
    %1380 = vmatpush1.msra.mxu0 %v595
    %1381 = vmatprep.subr.mxu0 0.0
    %1382 = vmatpush1.msra.mxu0 0.0
    %1383 = vmatprep.subr.mxu0 0.0
    %1384 = vmatpush1.msra.mxu0 0.0
    %1385 = vmatprep.subr.mxu0 0.0
    %1386 = vmatpush1.msra.mxu0 0.0
    %1387 = vmatprep.subr.mxu0 0.0
    %1388 = vmatpush1.msra.mxu0 0.0
    %1389 = vmatprep.subr.mxu0 0.0
    %1390 = vmatpush1.msra.mxu0 0.0
    %1391 = vmatprep.subr.mxu0 0.0
    %1392 = vmatpush1.msra.mxu0 0.0
    %1393 = vmatprep.subr.mxu0 0.0
    %1394 = vmatpush1.msra.mxu0 0.0
    %1395 = vmatprep.subr.mxu0 0.0
    %1396 = vmatpush1.msra.mxu0 0.0
    %1397 = vmatprep.subr.mxu0 0.0
    %1398 = vmatpush1.msra.mxu0 0.0
    %1399 = vmatprep.subr.mxu0 0.0
    %1400 = vmatpush1.msra.mxu0 0.0
    %1401 = vmatprep.subr.mxu0 0.0
    %1402 = vmatpush1.msra.mxu0 0.0
    %1403 = vmatprep.subr.mxu0 0.0
    %1404 = vmatpush1.msra.mxu0 0.0
    %1405 = vmatprep.subr.mxu0 0.0
    %1406 = vmatpush1.msra.mxu0 0.0
    %1407 = vmatprep.subr.mxu0 0.0
    %1408 = vmatpush1.msra.mxu0 0.0
    %1409 = vmatprep.subr.mxu0 0.0
    %1410 = vmatpush1.msra.mxu0 0.0
    %1411 = vmatprep.subr.mxu0 0.0
    %1412 = vmatpush1.msra.mxu0 0.0
    %1413 = vmatprep.mubr.f32.mxu0 0.0
    %1414 = vmatmul.mubr.f32.gmra.mrb[0].mxu0 %v1272
    %v1415 = vpop.f32.mrb[0].mxu0
    %v1416 = vadd.f32 0.0, %v1415
    %v1417 = vpop.f32.mrb[0].mxu0
    %1418 = vdwg.mxu0
    %v1419 = vadd.f32 %v1275, %v1345
    %v1420 = vxor.u32 %v1419, 2147483648
    %v1421 = vmul.f32 %v1420, 1.442695
    %v1422 = vpow.pop %v1421
    %v1423 = vadd.f32 %v1422, 1.0
    %v1424 = vrcp.pop %v1423
    %v1425 = vmul.f32 1.0, %v1424
    %v1426 = vadd.f32 %v1276, %v1347
    %v1427 = vxor.u32 %v1426, 2147483648
    %v1428 = vmul.f32 %v1427, 1.442695
    %v1429 = vpow.pop %v1428
    %v1430 = vadd.f32 %v1429, 1.0
    %v1431 = vrcp.pop %v1430
    %v1432 = vmul.f32 1.0, %v1431
    %v1433 = vadd.f32 %v1416, %v601
    %v1434 = vmul.f32 %v1425, %v1433
    %v1435 = vadd.f32 %v1277, %v1434
    %v1436 = vtanh.pop %v1435
    %v1437 = vsub.f32 1.0, %v1432
    %v1438 = vmul.f32 %v1437, %v1436
    %v1439 = vmul.f32 %v1432, %v1272
    %v1440 = vadd.f32 %v1438, %v1439
    %1441 = vst [vmem:[#allocation2 + $0x20] sm:$0xff] %v1440
    %1442 = vst [vmem:[#allocation3 + $0x18] sm:$0xff] %v1440
    %v1443 = vadd.f32 %v206, %v409
    %v1444 = vadd.f32 %v208, %v411
    %v1445 = vadd.f32 %v314, %v520
    %1446 = vmatprep.subr.mxu0 %v549
    %1447 = vmatpush1.msra.mxu0 %v548
    %1448 = vmatprep.subr.mxu0 %v552
    %1449 = vmatpush1.msra.mxu0 %v551
    %1450 = vmatprep.subr.mxu0 %v555
    %1451 = vmatpush1.msra.mxu0 %v554
    %1452 = vmatprep.subr.mxu0 %v558
    %1453 = vmatpush1.msra.mxu0 %v557
    %1454 = vmatprep.subr.mxu0 %v561
    %1455 = vmatpush1.msra.mxu0 %v560
    %1456 = vmatprep.subr.mxu0 %v564
    %1457 = vmatpush1.msra.mxu0 %v563
    %1458 = vmatprep.subr.mxu0 %v567
    %1459 = vmatpush1.msra.mxu0 %v566
    %1460 = vmatprep.subr.mxu0 %v570
    %1461 = vmatpush1.msra.mxu0 %v569
    %1462 = vmatprep.subr.mxu0 %v573
    %1463 = vmatpush1.msra.mxu0 %v572
    %1464 = vmatprep.subr.mxu0 %v576
    %1465 = vmatpush1.msra.mxu0 %v575
    %1466 = vmatprep.subr.mxu0 %v579
    %1467 = vmatpush1.msra.mxu0 %v578
    %1468 = vmatprep.subr.mxu0 %v582
    %1469 = vmatpush1.msra.mxu0 %v581
    %1470 = vmatprep.subr.mxu0 %v585
    %1471 = vmatpush1.msra.mxu0 %v584
    %1472 = vmatprep.subr.mxu0 %v588
    %1473 = vmatpush1.msra.mxu0 %v587
    %1474 = vmatprep.subr.mxu0 %v591
    %1475 = vmatpush1.msra.mxu0 %v590
    %1476 = vmatprep.subr.mxu0 %v594
    %1477 = vmatpush1.msra.mxu0 %v593
    %1478 = vmatprep.subr.mxu0 0.0
    %1479 = vmatpush1.msra.mxu0 0.0
    %1480 = vmatprep.subr.mxu0 0.0
    %1481 = vmatpush1.msra.mxu0 0.0
    %1482 = vmatprep.subr.mxu0 0.0
    %1483 = vmatpush1.msra.mxu0 0.0
    %1484 = vmatprep.subr.mxu0 0.0
    %1485 = vmatpush1.msra.mxu0 0.0
    %1486 = vmatprep.subr.mxu0 0.0
    %1487 = vmatpush1.msra.mxu0 0.0
    %1488 = vmatprep.subr.mxu0 0.0
    %1489 = vmatpush1.msra.mxu0 0.0
    %1490 = vmatprep.subr.mxu0 0.0
    %1491 = vmatpush1.msra.mxu0 0.0
    %1492 = vmatprep.subr.mxu0 0.0
    %1493 = vmatpush1.msra.mxu0 0.0
    %1494 = vmatprep.subr.mxu0 0.0
    %1495 = vmatpush1.msra.mxu0 0.0
    %1496 = vmatprep.subr.mxu0 0.0
    %1497 = vmatpush1.msra.mxu0 0.0
    %1498 = vmatprep.subr.mxu0 0.0
    %1499 = vmatpush1.msra.mxu0 0.0
    %1500 = vmatprep.subr.mxu0 0.0
    %1501 = vmatpush1.msra.mxu0 0.0
    %1502 = vmatprep.subr.mxu0 0.0
    %1503 = vmatpush1.msra.mxu0 0.0
    %1504 = vmatprep.subr.mxu0 0.0
    %1505 = vmatpush1.msra.mxu0 0.0
    %1506 = vmatprep.subr.mxu0 0.0
    %1507 = vmatpush1.msra.mxu0 0.0
    %1508 = vmatprep.subr.mxu0 0.0
    %1509 = vmatpush1.msra.mxu0 0.0
    %1510 = vmatprep.mubr.f32.mxu0 0.0
    %1511 = vmatmul.mubr.f32.gmra.mrb[0].mxu0 %v1440
    %v1512 = vpop.f32.mrb[0].mxu0
    %v1513 = vadd.f32 0.0, %v1512
    %v1514 = vpop.f32.mrb[0].mxu0
    %v1515 = vadd.f32 0.0, %v1514
    %1516 = vdwg.mxu0
    %1517 = vmatprep.subr.mxu0 0.0
    %1518 = vmatpush1.msra.mxu0 %v550
    %1519 = vmatprep.subr.mxu0 0.0
    %1520 = vmatpush1.msra.mxu0 %v553
    %1521 = vmatprep.subr.mxu0 0.0
    %1522 = vmatpush1.msra.mxu0 %v556
    %1523 = vmatprep.subr.mxu0 0.0
    %1524 = vmatpush1.msra.mxu0 %v559
    %1525 = vmatprep.subr.mxu0 0.0
    %1526 = vmatpush1.msra.mxu0 %v562
    %1527 = vmatprep.subr.mxu0 0.0
    %1528 = vmatpush1.msra.mxu0 %v565
    %1529 = vmatprep.subr.mxu0 0.0
    %1530 = vmatpush1.msra.mxu0 %v568
    %1531 = vmatprep.subr.mxu0 0.0
    %1532 = vmatpush1.msra.mxu0 %v571
    %1533 = vmatprep.subr.mxu0 0.0
    %1534 = vmatpush1.msra.mxu0 %v574
    %1535 = vmatprep.subr.mxu0 0.0
    %1536 = vmatpush1.msra.mxu0 %v577
    %1537 = vmatprep.subr.mxu0 0.0
    %1538 = vmatpush1.msra.mxu0 %v580
    %1539 = vmatprep.subr.mxu0 0.0
    %1540 = vmatpush1.msra.mxu0 %v583
    %1541 = vmatprep.subr.mxu0 0.0
    %1542 = vmatpush1.msra.mxu0 %v586
    %1543 = vmatprep.subr.mxu0 0.0
    %1544 = vmatpush1.msra.mxu0 %v589
    %1545 = vmatprep.subr.mxu0 0.0
    %1546 = vmatpush1.msra.mxu0 %v592
    %1547 = vmatprep.subr.mxu0 0.0
    %1548 = vmatpush1.msra.mxu0 %v595
    %1549 = vmatprep.subr.mxu0 0.0
    %1550 = vmatpush1.msra.mxu0 0.0
    %1551 = vmatprep.subr.mxu0 0.0
    %1552 = vmatpush1.msra.mxu0 0.0
    %1553 = vmatprep.subr.mxu0 0.0
    %1554 = vmatpush1.msra.mxu0 0.0
    %1555 = vmatprep.subr.mxu0 0.0
    %1556 = vmatpush1.msra.mxu0 0.0
    %1557 = vmatprep.subr.mxu0 0.0
    %1558 = vmatpush1.msra.mxu0 0.0
    %1559 = vmatprep.subr.mxu0 0.0
    %1560 = vmatpush1.msra.mxu0 0.0
    %1561 = vmatprep.subr.mxu0 0.0
    %1562 = vmatpush1.msra.mxu0 0.0
    %1563 = vmatprep.subr.mxu0 0.0
    %1564 = vmatpush1.msra.mxu0 0.0
    %1565 = vmatprep.subr.mxu0 0.0
    %1566 = vmatpush1.msra.mxu0 0.0
    %1567 = vmatprep.subr.mxu0 0.0
    %1568 = vmatpush1.msra.mxu0 0.0
    %1569 = vmatprep.subr.mxu0 0.0
    %1570 = vmatpush1.msra.mxu0 0.0
    %1571 = vmatprep.subr.mxu0 0.0
    %1572 = vmatpush1.msra.mxu0 0.0
    %1573 = vmatprep.subr.mxu0 0.0
    %1574 = vmatpush1.msra.mxu0 0.0
    %1575 = vmatprep.subr.mxu0 0.0
    %1576 = vmatpush1.msra.mxu0 0.0
    %1577 = vmatprep.subr.mxu0 0.0
    %1578 = vmatpush1.msra.mxu0 0.0
    %1579 = vmatprep.subr.mxu0 0.0
    %1580 = vmatpush1.msra.mxu0 0.0
    %1581 = vmatprep.mubr.f32.mxu0 0.0
    %1582 = vmatmul.mubr.f32.gmra.mrb[0].mxu0 %v1440
    %v1583 = vpop.f32.mrb[0].mxu0
    %v1584 = vadd.f32 0.0, %v1583
    %v1585 = vpop.f32.mrb[0].mxu0
    %1586 = vdwg.mxu0
    %v1587 = vadd.f32 %v1443, %v1513
    %v1588 = vxor.u32 %v1587, 2147483648
    %v1589 = vmul.f32 %v1588, 1.442695
    %v1590 = vpow.pop %v1589
    %v1591 = vadd.f32 %v1590, 1.0
    %v1592 = vrcp.pop %v1591
    %v1593 = vmul.f32 1.0, %v1592
    %v1594 = vadd.f32 %v1444, %v1515
    %v1595 = vxor.u32 %v1594, 2147483648
    %v1596 = vmul.f32 %v1595, 1.442695
    %v1597 = vpow.pop %v1596
    %v1598 = vadd.f32 %v1597, 1.0
    %v1599 = vrcp.pop %v1598
    %v1600 = vmul.f32 1.0, %v1599
    %v1601 = vadd.f32 %v1584, %v601
    %v1602 = vmul.f32 %v1593, %v1601
    %v1603 = vadd.f32 %v1445, %v1602
    %v1604 = vtanh.pop %v1603
    %v1605 = vsub.f32 1.0, %v1600
    %v1606 = vmul.f32 %v1605, %v1604
    %v1607 = vmul.f32 %v1600, %v1440
    %v1608 = vadd.f32 %v1606, %v1607
    %1609 = vst [vmem:[#allocation2 + $0x28] sm:$0xff] %v1608
    %1610 = vst [vmem:[#allocation3 + $0x10] sm:$0xff] %v1608
    %v1611 = vadd.f32 %v212, %v403
    %v1612 = vadd.f32 %v214, %v405
    %v1613 = vadd.f32 %v319, %v515
    %1614 = vmatprep.subr.mxu0 %v549
    %1615 = vmatpush1.msra.mxu0 %v548
    %1616 = vmatprep.subr.mxu0 %v552
    %1617 = vmatpush1.msra.mxu0 %v551
    %1618 = vmatprep.subr.mxu0 %v555
    %1619 = vmatpush1.msra.mxu0 %v554
    %1620 = vmatprep.subr.mxu0 %v558
    %1621 = vmatpush1.msra.mxu0 %v557
    %1622 = vmatprep.subr.mxu0 %v561
    %1623 = vmatpush1.msra.mxu0 %v560
    %1624 = vmatprep.subr.mxu0 %v564
    %1625 = vmatpush1.msra.mxu0 %v563
    %1626 = vmatprep.subr.mxu0 %v567
    %1627 = vmatpush1.msra.mxu0 %v566
    %1628 = vmatprep.subr.mxu0 %v570
    %1629 = vmatpush1.msra.mxu0 %v569
    %1630 = vmatprep.subr.mxu0 %v573
    %1631 = vmatpush1.msra.mxu0 %v572
    %1632 = vmatprep.subr.mxu0 %v576
    %1633 = vmatpush1.msra.mxu0 %v575
    %1634 = vmatprep.subr.mxu0 %v579
    %1635 = vmatpush1.msra.mxu0 %v578
    %1636 = vmatprep.subr.mxu0 %v582
    %1637 = vmatpush1.msra.mxu0 %v581
    %1638 = vmatprep.subr.mxu0 %v585
    %1639 = vmatpush1.msra.mxu0 %v584
    %1640 = vmatprep.subr.mxu0 %v588
    %1641 = vmatpush1.msra.mxu0 %v587
    %1642 = vmatprep.subr.mxu0 %v591
    %1643 = vmatpush1.msra.mxu0 %v590
    %1644 = vmatprep.subr.mxu0 %v594
    %1645 = vmatpush1.msra.mxu0 %v593
    %1646 = vmatprep.subr.mxu0 0.0
    %1647 = vmatpush1.msra.mxu0 0.0
    %1648 = vmatprep.subr.mxu0 0.0
    %1649 = vmatpush1.msra.mxu0 0.0
    %1650 = vmatprep.subr.mxu0 0.0
    %1651 = vmatpush1.msra.mxu0 0.0
    %1652 = vmatprep.subr.mxu0 0.0
    %1653 = vmatpush1.msra.mxu0 0.0
    %1654 = vmatprep.subr.mxu0 0.0
    %1655 = vmatpush1.msra.mxu0 0.0
    %1656 = vmatprep.subr.mxu0 0.0
    %1657 = vmatpush1.msra.mxu0 0.0
    %1658 = vmatprep.subr.mxu0 0.0
    %1659 = vmatpush1.msra.mxu0 0.0
    %1660 = vmatprep.subr.mxu0 0.0
    %1661 = vmatpush1.msra.mxu0 0.0
    %1662 = vmatprep.subr.mxu0 0.0
    %1663 = vmatpush1.msra.mxu0 0.0
    %1664 = vmatprep.subr.mxu0 0.0
    %1665 = vmatpush1.msra.mxu0 0.0
    %1666 = vmatprep.subr.mxu0 0.0
    %1667 = vmatpush1.msra.mxu0 0.0
    %1668 = vmatprep.subr.mxu0 0.0
    %1669 = vmatpush1.msra.mxu0 0.0
    %1670 = vmatprep.subr.mxu0 0.0
    %1671 = vmatpush1.msra.mxu0 0.0
    %1672 = vmatprep.subr.mxu0 0.0
    %1673 = vmatpush1.msra.mxu0 0.0
    %1674 = vmatprep.subr.mxu0 0.0
    %1675 = vmatpush1.msra.mxu0 0.0
    %1676 = vmatprep.subr.mxu0 0.0
    %1677 = vmatpush1.msra.mxu0 0.0
    %1678 = vmatprep.mubr.f32.mxu0 0.0
    %1679 = vmatmul.mubr.f32.gmra.mrb[0].mxu0 %v1608
    %v1680 = vpop.f32.mrb[0].mxu0
    %v1681 = vadd.f32 0.0, %v1680
    %v1682 = vpop.f32.mrb[0].mxu0
    %v1683 = vadd.f32 0.0, %v1682
    %1684 = vdwg.mxu0
    %1685 = vmatprep.subr.mxu0 0.0
    %1686 = vmatpush1.msra.mxu0 %v550
    %1687 = vmatprep.subr.mxu0 0.0
    %1688 = vmatpush1.msra.mxu0 %v553
    %1689 = vmatprep.subr.mxu0 0.0
    %1690 = vmatpush1.msra.mxu0 %v556
    %1691 = vmatprep.subr.mxu0 0.0
    %1692 = vmatpush1.msra.mxu0 %v559
    %1693 = vmatprep.subr.mxu0 0.0
    %1694 = vmatpush1.msra.mxu0 %v562
    %1695 = vmatprep.subr.mxu0 0.0
    %1696 = vmatpush1.msra.mxu0 %v565
    %1697 = vmatprep.subr.mxu0 0.0
    %1698 = vmatpush1.msra.mxu0 %v568
    %1699 = vmatprep.subr.mxu0 0.0
    %1700 = vmatpush1.msra.mxu0 %v571
    %1701 = vmatprep.subr.mxu0 0.0
    %1702 = vmatpush1.msra.mxu0 %v574
    %1703 = vmatprep.subr.mxu0 0.0
    %1704 = vmatpush1.msra.mxu0 %v577
    %1705 = vmatprep.subr.mxu0 0.0
    %1706 = vmatpush1.msra.mxu0 %v580
    %1707 = vmatprep.subr.mxu0 0.0
    %1708 = vmatpush1.msra.mxu0 %v583
    %1709 = vmatprep.subr.mxu0 0.0
    %1710 = vmatpush1.msra.mxu0 %v586
    %1711 = vmatprep.subr.mxu0 0.0
    %1712 = vmatpush1.msra.mxu0 %v589
    %1713 = vmatprep.subr.mxu0 0.0
    %1714 = vmatpush1.msra.mxu0 %v592
    %1715 = vmatprep.subr.mxu0 0.0
    %1716 = vmatpush1.msra.mxu0 %v595
    %1717 = vmatprep.subr.mxu0 0.0
    %1718 = vmatpush1.msra.mxu0 0.0
    %1719 = vmatprep.subr.mxu0 0.0
    %1720 = vmatpush1.msra.mxu0 0.0
    %1721 = vmatprep.subr.mxu0 0.0
    %1722 = vmatpush1.msra.mxu0 0.0
    %1723 = vmatprep.subr.mxu0 0.0
    %1724 = vmatpush1.msra.mxu0 0.0
    %1725 = vmatprep.subr.mxu0 0.0
    %1726 = vmatpush1.msra.mxu0 0.0
    %1727 = vmatprep.subr.mxu0 0.0
    %1728 = vmatpush1.msra.mxu0 0.0
    %1729 = vmatprep.subr.mxu0 0.0
    %1730 = vmatpush1.msra.mxu0 0.0
    %1731 = vmatprep.subr.mxu0 0.0
    %1732 = vmatpush1.msra.mxu0 0.0
    %1733 = vmatprep.subr.mxu0 0.0
    %1734 = vmatpush1.msra.mxu0 0.0
    %1735 = vmatprep.subr.mxu0 0.0
    %1736 = vmatpush1.msra.mxu0 0.0
    %1737 = vmatprep.subr.mxu0 0.0
    %1738 = vmatpush1.msra.mxu0 0.0
    %1739 = vmatprep.subr.mxu0 0.0
    %1740 = vmatpush1.msra.mxu0 0.0
    %1741 = vmatprep.subr.mxu0 0.0
    %1742 = vmatpush1.msra.mxu0 0.0
    %1743 = vmatprep.subr.mxu0 0.0
    %1744 = vmatpush1.msra.mxu0 0.0
    %1745 = vmatprep.subr.mxu0 0.0
    %1746 = vmatpush1.msra.mxu0 0.0
    %1747 = vmatprep.subr.mxu0 0.0
    %1748 = vmatpush1.msra.mxu0 0.0
    %1749 = vmatprep.mubr.f32.mxu0 0.0
    %1750 = vmatmul.mubr.f32.gmra.mrb[0].mxu0 %v1608
    %v1751 = vpop.f32.mrb[0].mxu0
    %v1752 = vadd.f32 0.0, %v1751
    %v1753 = vpop.f32.mrb[0].mxu0
    %1754 = vdwg.mxu0
    %v1755 = vadd.f32 %v1611, %v1681
    %v1756 = vxor.u32 %v1755, 2147483648
    %v1757 = vmul.f32 %v1756, 1.442695
    %v1758 = vpow.pop %v1757
    %v1759 = vadd.f32 %v1758, 1.0
    %v1760 = vrcp.pop %v1759
    %v1761 = vmul.f32 1.0, %v1760
    %v1762 = vadd.f32 %v1612, %v1683
    %v1763 = vxor.u32 %v1762, 2147483648
    %v1764 = vmul.f32 %v1763, 1.442695
    %v1765 = vpow.pop %v1764
    %v1766 = vadd.f32 %v1765, 1.0
    %v1767 = vrcp.pop %v1766
    %v1768 = vmul.f32 1.0, %v1767
    %v1769 = vadd.f32 %v1752, %v601
    %v1770 = vmul.f32 %v1761, %v1769
    %v1771 = vadd.f32 %v1613, %v1770
    %v1772 = vtanh.pop %v1771
    %v1773 = vsub.f32 1.0, %v1768
    %v1774 = vmul.f32 %v1773, %v1772
    %v1775 = vmul.f32 %v1768, %v1608
    %v1776 = vadd.f32 %v1774, %v1775
    %1777 = vst [vmem:[#allocation2 + $0x30] sm:$0xff] %v1776
    %1778 = vst [vmem:[#allocation3 + $0x8] sm:$0xff] %v1776
    %v1779 = vadd.f32 %v218, %v397
    %v1780 = vadd.f32 %v220, %v399
    %v1781 = vadd.f32 %v324, %v510
    %1782 = vmatprep.subr.mxu0 %v549
    %1783 = vmatpush1.msra.mxu0 %v548
    %1784 = vmatprep.subr.mxu0 %v552
    %1785 = vmatpush1.msra.mxu0 %v551
    %1786 = vmatprep.subr.mxu0 %v555
    %1787 = vmatpush1.msra.mxu0 %v554
    %1788 = vmatprep.subr.mxu0 %v558
    %1789 = vmatpush1.msra.mxu0 %v557
    %1790 = vmatprep.subr.mxu0 %v561
    %1791 = vmatpush1.msra.mxu0 %v560
    %1792 = vmatprep.subr.mxu0 %v564
    %1793 = vmatpush1.msra.mxu0 %v563
    %1794 = vmatprep.subr.mxu0 %v567
    %1795 = vmatpush1.msra.mxu0 %v566
    %1796 = vmatprep.subr.mxu0 %v570
    %1797 = vmatpush1.msra.mxu0 %v569
    %1798 = vmatprep.subr.mxu0 %v573
    %1799 = vmatpush1.msra.mxu0 %v572
    %1800 = vmatprep.subr.mxu0 %v576
    %1801 = vmatpush1.msra.mxu0 %v575
    %1802 = vmatprep.subr.mxu0 %v579
    %1803 = vmatpush1.msra.mxu0 %v578
    %1804 = vmatprep.subr.mxu0 %v582
    %1805 = vmatpush1.msra.mxu0 %v581
    %1806 = vmatprep.subr.mxu0 %v585
    %1807 = vmatpush1.msra.mxu0 %v584
    %1808 = vmatprep.subr.mxu0 %v588
    %1809 = vmatpush1.msra.mxu0 %v587
    %1810 = vmatprep.subr.mxu0 %v591
    %1811 = vmatpush1.msra.mxu0 %v590
    %1812 = vmatprep.subr.mxu0 %v594
    %1813 = vmatpush1.msra.mxu0 %v593
    %1814 = vmatprep.subr.mxu0 0.0
    %1815 = vmatpush1.msra.mxu0 0.0
    %1816 = vmatprep.subr.mxu0 0.0
    %1817 = vmatpush1.msra.mxu0 0.0
    %1818 = vmatprep.subr.mxu0 0.0
    %1819 = vmatpush1.msra.mxu0 0.0
    %1820 = vmatprep.subr.mxu0 0.0
    %1821 = vmatpush1.msra.mxu0 0.0
    %1822 = vmatprep.subr.mxu0 0.0
    %1823 = vmatpush1.msra.mxu0 0.0
    %1824 = vmatprep.subr.mxu0 0.0
    %1825 = vmatpush1.msra.mxu0 0.0
    %1826 = vmatprep.subr.mxu0 0.0
    %1827 = vmatpush1.msra.mxu0 0.0
    %1828 = vmatprep.subr.mxu0 0.0
    %1829 = vmatpush1.msra.mxu0 0.0
    %1830 = vmatprep.subr.mxu0 0.0
    %1831 = vmatpush1.msra.mxu0 0.0
    %1832 = vmatprep.subr.mxu0 0.0
    %1833 = vmatpush1.msra.mxu0 0.0
    %1834 = vmatprep.subr.mxu0 0.0
    %1835 = vmatpush1.msra.mxu0 0.0
    %1836 = vmatprep.subr.mxu0 0.0
    %1837 = vmatpush1.msra.mxu0 0.0
    %1838 = vmatprep.subr.mxu0 0.0
    %1839 = vmatpush1.msra.mxu0 0.0
    %1840 = vmatprep.subr.mxu0 0.0
    %1841 = vmatpush1.msra.mxu0 0.0
    %1842 = vmatprep.subr.mxu0 0.0
    %1843 = vmatpush1.msra.mxu0 0.0
    %1844 = vmatprep.subr.mxu0 0.0
    %1845 = vmatpush1.msra.mxu0 0.0
    %1846 = vmatprep.mubr.f32.mxu0 0.0
    %1847 = vmatmul.mubr.f32.gmra.mrb[0].mxu0 %v1776
    %v1848 = vpop.f32.mrb[0].mxu0
    %v1849 = vadd.f32 0.0, %v1848
    %v1850 = vpop.f32.mrb[0].mxu0
    %v1851 = vadd.f32 0.0, %v1850
    %1852 = vdwg.mxu0
    %1853 = vmatprep.subr.mxu0 0.0
    %1854 = vmatpush1.msra.mxu0 %v550
    %1855 = vmatprep.subr.mxu0 0.0
    %1856 = vmatpush1.msra.mxu0 %v553
    %1857 = vmatprep.subr.mxu0 0.0
    %1858 = vmatpush1.msra.mxu0 %v556
    %1859 = vmatprep.subr.mxu0 0.0
    %1860 = vmatpush1.msra.mxu0 %v559
    %1861 = vmatprep.subr.mxu0 0.0
    %1862 = vmatpush1.msra.mxu0 %v562
    %1863 = vmatprep.subr.mxu0 0.0
    %1864 = vmatpush1.msra.mxu0 %v565
    %1865 = vmatprep.subr.mxu0 0.0
    %1866 = vmatpush1.msra.mxu0 %v568
    %1867 = vmatprep.subr.mxu0 0.0
    %1868 = vmatpush1.msra.mxu0 %v571
    %1869 = vmatprep.subr.mxu0 0.0
    %1870 = vmatpush1.msra.mxu0 %v574
    %1871 = vmatprep.subr.mxu0 0.0
    %1872 = vmatpush1.msra.mxu0 %v577
    %1873 = vmatprep.subr.mxu0 0.0
    %1874 = vmatpush1.msra.mxu0 %v580
    %1875 = vmatprep.subr.mxu0 0.0
    %1876 = vmatpush1.msra.mxu0 %v583
    %1877 = vmatprep.subr.mxu0 0.0
    %1878 = vmatpush1.msra.mxu0 %v586
    %1879 = vmatprep.subr.mxu0 0.0
    %1880 = vmatpush1.msra.mxu0 %v589
    %1881 = vmatprep.subr.mxu0 0.0
    %1882 = vmatpush1.msra.mxu0 %v592
    %1883 = vmatprep.subr.mxu0 0.0
    %1884 = vmatpush1.msra.mxu0 %v595
    %1885 = vmatprep.subr.mxu0 0.0
    %1886 = vmatpush1.msra.mxu0 0.0
    %1887 = vmatprep.subr.mxu0 0.0
    %1888 = vmatpush1.msra.mxu0 0.0
    %1889 = vmatprep.subr.mxu0 0.0
    %1890 = vmatpush1.msra.mxu0 0.0
    %1891 = vmatprep.subr.mxu0 0.0
    %1892 = vmatpush1.msra.mxu0 0.0
    %1893 = vmatprep.subr.mxu0 0.0
    %1894 = vmatpush1.msra.mxu0 0.0
    %1895 = vmatprep.subr.mxu0 0.0
    %1896 = vmatpush1.msra.mxu0 0.0
    %1897 = vmatprep.subr.mxu0 0.0
    %1898 = vmatpush1.msra.mxu0 0.0
    %1899 = vmatprep.subr.mxu0 0.0
    %1900 = vmatpush1.msra.mxu0 0.0
    %1901 = vmatprep.subr.mxu0 0.0
    %1902 = vmatpush1.msra.mxu0 0.0
    %1903 = vmatprep.subr.mxu0 0.0
    %1904 = vmatpush1.msra.mxu0 0.0
    %1905 = vmatprep.subr.mxu0 0.0
    %1906 = vmatpush1.msra.mxu0 0.0
    %1907 = vmatprep.subr.mxu0 0.0
    %1908 = vmatpush1.msra.mxu0 0.0
    %1909 = vmatprep.subr.mxu0 0.0
    %1910 = vmatpush1.msra.mxu0 0.0
    %1911 = vmatprep.subr.mxu0 0.0
    %1912 = vmatpush1.msra.mxu0 0.0
    %1913 = vmatprep.subr.mxu0 0.0
    %1914 = vmatpush1.msra.mxu0 0.0
    %1915 = vmatprep.subr.mxu0 0.0
    %1916 = vmatpush1.msra.mxu0 0.0
    %1917 = vmatprep.mubr.f32.mxu0 0.0
    %1918 = vmatmul.mubr.f32.gmra.mrb[0].mxu0 %v1776
    %v1919 = vpop.f32.mrb[0].mxu0
    %v1920 = vadd.f32 0.0, %v1919
    %v1921 = vpop.f32.mrb[0].mxu0
    %1922 = vdwg.mxu0
    %v1923 = vadd.f32 %v1779, %v1849
    %v1924 = vxor.u32 %v1923, 2147483648
    %v1925 = vmul.f32 %v1924, 1.442695
    %v1926 = vpow.pop %v1925
    %v1927 = vadd.f32 %v1926, 1.0
    %v1928 = vrcp.pop %v1927
    %v1929 = vmul.f32 1.0, %v1928
    %v1930 = vadd.f32 %v1780, %v1851
    %v1931 = vxor.u32 %v1930, 2147483648
    %v1932 = vmul.f32 %v1931, 1.442695
    %v1933 = vpow.pop %v1932
    %v1934 = vadd.f32 %v1933, 1.0
    %v1935 = vrcp.pop %v1934
    %v1936 = vmul.f32 1.0, %v1935
    %v1937 = vadd.f32 %v1920, %v601
    %v1938 = vmul.f32 %v1929, %v1937
    %v1939 = vadd.f32 %v1781, %v1938
    %v1940 = vtanh.pop %v1939
    %v1941 = vsub.f32 1.0, %v1936
    %v1942 = vmul.f32 %v1941, %v1940
    %v1943 = vmul.f32 %v1936, %v1776
    %v1944 = vadd.f32 %v1942, %v1943
    %1945 = vst [vmem:[#allocation2 + $0x38] sm:$0xff] %v1944
    %1946 = vst [vmem:[#allocation3] sm:$0xff] %v1944
    %v1947 = vld [vmem:[#allocation2] sm:$0xff]
    %v1948 = vld [vmem:[#allocation2 + $0x8] sm:$0xff]
    %v1949 = vld [vmem:[#allocation2 + $0x10] sm:$0xff]
    %v1950 = vld [vmem:[#allocation2 + $0x18] sm:$0xff]
    %v1951 = vld [vmem:[#allocation2 + $0x20] sm:$0xff]
    %v1952 = vld [vmem:[#allocation2 + $0x28] sm:$0xff]
    %v1953 = vld [vmem:[#allocation2 + $0x30] sm:$0xff]
    %v1954 = vld [vmem:[#allocation2 + $0x38] sm:$0xff]
    %v1955 = vld [vmem:[%s6] sm:$0xff]
    %v1956 = vld [vmem:[%s6 + $0x8] sm:$0xff]
    %v1957 = vld [vmem:[%s6 + $0x10] sm:$0xff]
    %v1958 = vld [vmem:[%s6 + $0x18] sm:$0xff]
    %v1959 = vld [vmem:[%s6 + $0x20] sm:$0xff]
    %v1960 = vld [vmem:[%s6 + $0x28] sm:$0xff]
    %v1961 = vld [vmem:[%s6 + $0x30] sm:$0xff]
    %v1962 = vld [vmem:[%s6 + $0x38] sm:$0xff]
    %v1963 = vld [vmem:[%s6 + $0x40] sm:$0xff]
    %v1964 = vld [vmem:[%s6 + $0x48] sm:$0xff]
    %v1965 = vld [vmem:[%s6 + $0x50] sm:$0xff]
    %v1966 = vld [vmem:[%s6 + $0x58] sm:$0xff]
    %v1967 = vld [vmem:[%s6 + $0x60] sm:$0xff]
    %v1968 = vld [vmem:[%s6 + $0x68] sm:$0xff]
    %v1969 = vld [vmem:[%s6 + $0x70] sm:$0xff]
    %v1970 = vld [vmem:[%s6 + $0x78] sm:$0xff]
    %v1971 = vld [vmem:[#allocation3] sm:$0xff]
    %v1972 = vld [vmem:[#allocation3 + $0x8] sm:$0xff]
    %v1973 = vld [vmem:[#allocation3 + $0x10] sm:$0xff]
    %v1974 = vld [vmem:[#allocation3 + $0x18] sm:$0xff]
    %v1975 = vld [vmem:[#allocation3 + $0x20] sm:$0xff]
    %v1976 = vld [vmem:[#allocation3 + $0x28] sm:$0xff]
    %v1977 = vld [vmem:[#allocation3 + $0x30] sm:$0xff]
    %v1978 = vld [vmem:[#allocation3 + $0x38] sm:$0xff]
    %v1979 = vld [vmem:[%s7] sm:$0xff]
    %v1980 = vld [vmem:[%s7 + $0x8] sm:$0xff]
    %v1981 = vld [vmem:[%s7 + $0x10] sm:$0xff]
    %v1982 = vld [vmem:[%s7 + $0x18] sm:$0xff]
    %v1983 = vld [vmem:[%s7 + $0x20] sm:$0xff]
    %v1984 = vld [vmem:[%s7 + $0x28] sm:$0xff]
    %v1985 = vld [vmem:[%s7 + $0x30] sm:$0xff]
    %v1986 = vld [vmem:[%s7 + $0x38] sm:$0xff]
    %v1987 = vld [vmem:[%s7 + $0x40] sm:$0xff]
    %v1988 = vld [vmem:[%s7 + $0x48] sm:$0xff]
    %v1989 = vld [vmem:[%s7 + $0x50] sm:$0xff]
    %v1990 = vld [vmem:[%s7 + $0x58] sm:$0xff]
    %v1991 = vld [vmem:[%s7 + $0x60] sm:$0xff]
    %v1992 = vld [vmem:[%s7 + $0x68] sm:$0xff]
    %v1993 = vld [vmem:[%s7 + $0x70] sm:$0xff]
    %v1994 = vld [vmem:[%s7 + $0x78] sm:$0xff]
    %1995 = vmatprep.subr.mxu0 0.0
    %1996 = vmatpush1.msra.mxu0 %v1979
    %1997 = vmatprep.subr.mxu0 0.0
    %1998 = vmatpush1.msra.mxu0 %v1980
    %1999 = vmatprep.subr.mxu0 0.0
    %2000 = vmatpush1.msra.mxu0 %v1981
    %2001 = vmatprep.subr.mxu0 0.0
    %2002 = vmatpush1.msra.mxu0 %v1982
    %2003 = vmatprep.subr.mxu0 0.0
    %2004 = vmatpush1.msra.mxu0 %v1983
    %2005 = vmatprep.subr.mxu0 0.0
    %2006 = vmatpush1.msra.mxu0 %v1984
    %2007 = vmatprep.subr.mxu0 0.0
    %2008 = vmatpush1.msra.mxu0 %v1985
    %2009 = vmatprep.subr.mxu0 0.0
    %2010 = vmatpush1.msra.mxu0 %v1986
    %2011 = vmatprep.subr.mxu0 0.0
    %2012 = vmatpush1.msra.mxu0 %v1987
    %2013 = vmatprep.subr.mxu0 0.0
    %2014 = vmatpush1.msra.mxu0 %v1988
    %2015 = vmatprep.subr.mxu0 0.0
    %2016 = vmatpush1.msra.mxu0 %v1989
    %2017 = vmatprep.subr.mxu0 0.0
    %2018 = vmatpush1.msra.mxu0 %v1990
    %2019 = vmatprep.subr.mxu0 0.0
    %2020 = vmatpush1.msra.mxu0 %v1991
    %2021 = vmatprep.subr.mxu0 0.0
    %2022 = vmatpush1.msra.mxu0 %v1992
    %2023 = vmatprep.subr.mxu0 0.0
    %2024 = vmatpush1.msra.mxu0 %v1993
    %2025 = vmatprep.subr.mxu0 0.0
    %2026 = vmatpush1.msra.mxu0 %v1994
    %2027 = vmatprep.subr.mxu0 0.0
    %2028 = vmatpush1.msra.mxu0 0.0
    %2029 = vmatprep.subr.mxu0 0.0
    %2030 = vmatpush1.msra.mxu0 0.0
    %2031 = vmatprep.subr.mxu0 0.0
    %2032 = vmatpush1.msra.mxu0 0.0
    %2033 = vmatprep.subr.mxu0 0.0
    %2034 = vmatpush1.msra.mxu0 0.0
    %2035 = vmatprep.subr.mxu0 0.0
    %2036 = vmatpush1.msra.mxu0 0.0
    %2037 = vmatprep.subr.mxu0 0.0
    %2038 = vmatpush1.msra.mxu0 0.0
    %2039 = vmatprep.subr.mxu0 0.0
    %2040 = vmatpush1.msra.mxu0 0.0
    %2041 = vmatprep.subr.mxu0 0.0
    %2042 = vmatpush1.msra.mxu0 0.0
    %2043 = vmatprep.subr.mxu0 0.0
    %2044 = vmatpush1.msra.mxu0 0.0
    %2045 = vmatprep.subr.mxu0 0.0
    %2046 = vmatpush1.msra.mxu0 0.0
    %2047 = vmatprep.subr.mxu0 0.0
    %2048 = vmatpush1.msra.mxu0 0.0
    %2049 = vmatprep.subr.mxu0 0.0
    %2050 = vmatpush1.msra.mxu0 0.0
    %2051 = vmatprep.subr.mxu0 0.0
    %2052 = vmatpush1.msra.mxu0 0.0
    %2053 = vmatprep.subr.mxu0 0.0
    %2054 = vmatpush1.msra.mxu0 0.0
    %2055 = vmatprep.subr.mxu0 0.0
    %2056 = vmatpush1.msra.mxu0 0.0
    %2057 = vmatprep.subr.mxu0 0.0
    %2058 = vmatpush1.msra.mxu0 0.0
    %2059 = vmatprep.mubr.f32.mxu0 0.0
    %2060 = vmatmul.mubr.f32.gmra.mrb[0].mxu0 %v1971
    %v2061 = vpop.f32.mrb[0].mxu0
    %v2062 = vadd.f32 0.0, %v2061
    %v2063 = vpop.f32.mrb[0].mxu0
    %2064 = vmatprep.mubr.f32.mxu0 0.0
    %2065 = vmatmul.mubr.f32.gmra.mrb[0].mxu0 %v1972
    %v2066 = vpop.f32.mrb[0].mxu0
    %v2067 = vadd.f32 0.0, %v2066
    %v2068 = vpop.f32.mrb[0].mxu0
    %2069 = vmatprep.mubr.f32.mxu0 0.0
    %2070 = vmatmul.mubr.f32.gmra.mrb[0].mxu0 %v1973
    %v2071 = vpop.f32.mrb[0].mxu0
    %v2072 = vadd.f32 0.0, %v2071
    %v2073 = vpop.f32.mrb[0].mxu0
    %2074 = vmatprep.mubr.f32.mxu0 0.0
    %2075 = vmatmul.mubr.f32.gmra.mrb[0].mxu0 %v1974
    %v2076 = vpop.f32.mrb[0].mxu0
    %v2077 = vadd.f32 0.0, %v2076
    %v2078 = vpop.f32.mrb[0].mxu0
    %2079 = vmatprep.mubr.f32.mxu0 0.0
    %2080 = vmatmul.mubr.f32.gmra.mrb[0].mxu0 %v1975
    %v2081 = vpop.f32.mrb[0].mxu0
    %v2082 = vadd.f32 0.0, %v2081
    %v2083 = vpop.f32.mrb[0].mxu0
    %2084 = vmatprep.mubr.f32.mxu0 0.0
    %2085 = vmatmul.mubr.f32.gmra.mrb[0].mxu0 %v1976
    %v2086 = vpop.f32.mrb[0].mxu0
    %v2087 = vadd.f32 0.0, %v2086
    %v2088 = vpop.f32.mrb[0].mxu0
    %2089 = vmatprep.mubr.f32.mxu0 0.0
    %2090 = vmatmul.mubr.f32.gmra.mrb[0].mxu0 %v1977
    %v2091 = vpop.f32.mrb[0].mxu0
    %v2092 = vadd.f32 0.0, %v2091
    %v2093 = vpop.f32.mrb[0].mxu0
    %2094 = vmatprep.mubr.f32.mxu0 0.0
    %2095 = vmatmul.mubr.f32.gmra.mrb[0].mxu0 %v1978
    %v2096 = vpop.f32.mrb[0].mxu0
    %v2097 = vadd.f32 0.0, %v2096
    %v2098 = vpop.f32.mrb[0].mxu0
    %2099 = vdwg.mxu0
    %2100 = vmatprep.subr.mxu0 0.0
    %2101 = vmatpush1.msra.mxu0 %v1955
    %2102 = vmatprep.subr.mxu0 0.0
    %2103 = vmatpush1.msra.mxu0 %v1956
    %2104 = vmatprep.subr.mxu0 0.0
    %2105 = vmatpush1.msra.mxu0 %v1957
    %2106 = vmatprep.subr.mxu0 0.0
    %2107 = vmatpush1.msra.mxu0 %v1958
    %2108 = vmatprep.subr.mxu0 0.0
    %2109 = vmatpush1.msra.mxu0 %v1959
    %2110 = vmatprep.subr.mxu0 0.0
    %2111 = vmatpush1.msra.mxu0 %v1960
    %2112 = vmatprep.subr.mxu0 0.0
    %2113 = vmatpush1.msra.mxu0 %v1961
    %2114 = vmatprep.subr.mxu0 0.0
    %2115 = vmatpush1.msra.mxu0 %v1962
    %2116 = vmatprep.subr.mxu0 0.0
    %2117 = vmatpush1.msra.mxu0 %v1963
    %2118 = vmatprep.subr.mxu0 0.0
    %2119 = vmatpush1.msra.mxu0 %v1964
    %2120 = vmatprep.subr.mxu0 0.0
    %2121 = vmatpush1.msra.mxu0 %v1965
    %2122 = vmatprep.subr.mxu0 0.0
    %2123 = vmatpush1.msra.mxu0 %v1966
    %2124 = vmatprep.subr.mxu0 0.0
    %2125 = vmatpush1.msra.mxu0 %v1967
    %2126 = vmatprep.subr.mxu0 0.0
    %2127 = vmatpush1.msra.mxu0 %v1968
    %2128 = vmatprep.subr.mxu0 0.0
    %2129 = vmatpush1.msra.mxu0 %v1969
    %2130 = vmatprep.subr.mxu0 0.0
    %2131 = vmatpush1.msra.mxu0 %v1970
    %2132 = vmatprep.subr.mxu0 0.0
    %2133 = vmatpush1.msra.mxu0 0.0
    %2134 = vmatprep.subr.mxu0 0.0
    %2135 = vmatpush1.msra.mxu0 0.0
    %2136 = vmatprep.subr.mxu0 0.0
    %2137 = vmatpush1.msra.mxu0 0.0
    %2138 = vmatprep.subr.mxu0 0.0
    %2139 = vmatpush1.msra.mxu0 0.0
    %2140 = vmatprep.subr.mxu0 0.0
    %2141 = vmatpush1.msra.mxu0 0.0
    %2142 = vmatprep.subr.mxu0 0.0
    %2143 = vmatpush1.msra.mxu0 0.0
    %2144 = vmatprep.subr.mxu0 0.0
    %2145 = vmatpush1.msra.mxu0 0.0
    %2146 = vmatprep.subr.mxu0 0.0
    %2147 = vmatpush1.msra.mxu0 0.0
    %2148 = vmatprep.subr.mxu0 0.0
    %2149 = vmatpush1.msra.mxu0 0.0
    %2150 = vmatprep.subr.mxu0 0.0
    %2151 = vmatpush1.msra.mxu0 0.0
    %2152 = vmatprep.subr.mxu0 0.0
    %2153 = vmatpush1.msra.mxu0 0.0
    %2154 = vmatprep.subr.mxu0 0.0
    %2155 = vmatpush1.msra.mxu0 0.0
    %2156 = vmatprep.subr.mxu0 0.0
    %2157 = vmatpush1.msra.mxu0 0.0
    %2158 = vmatprep.subr.mxu0 0.0
    %2159 = vmatpush1.msra.mxu0 0.0
    %2160 = vmatprep.subr.mxu0 0.0
    %2161 = vmatpush1.msra.mxu0 0.0
    %2162 = vmatprep.subr.mxu0 0.0
    %2163 = vmatpush1.msra.mxu0 0.0
    %2164 = vmatprep.mubr.f32.mxu0 0.0
    %2165 = vmatmul.mubr.f32.gmra.mrb[0].mxu0 %v1947
    %v2166 = vpop.f32.mrb[0].mxu0
    %v2167 = vadd.f32 %v2062, %v2166
    %v2168 = vpop.f32.mrb[0].mxu0
    %2169 = vmatprep.mubr.f32.mxu0 0.0
    %2170 = vmatmul.mubr.f32.gmra.mrb[0].mxu0 %v1948
    %v2171 = vpop.f32.mrb[0].mxu0
    %v2172 = vadd.f32 %v2067, %v2171
    %v2173 = vpop.f32.mrb[0].mxu0
    %2174 = vmatprep.mubr.f32.mxu0 0.0
    %2175 = vmatmul.mubr.f32.gmra.mrb[0].mxu0 %v1949
    %v2176 = vpop.f32.mrb[0].mxu0
    %v2177 = vadd.f32 %v2072, %v2176
    %v2178 = vpop.f32.mrb[0].mxu0
    %2179 = vmatprep.mubr.f32.mxu0 0.0
    %2180 = vmatmul.mubr.f32.gmra.mrb[0].mxu0 %v1950
    %v2181 = vpop.f32.mrb[0].mxu0
    %v2182 = vadd.f32 %v2077, %v2181
    %v2183 = vpop.f32.mrb[0].mxu0
    %2184 = vmatprep.mubr.f32.mxu0 0.0
    %2185 = vmatmul.mubr.f32.gmra.mrb[0].mxu0 %v1951
    %v2186 = vpop.f32.mrb[0].mxu0
    %v2187 = vadd.f32 %v2082, %v2186
    %v2188 = vpop.f32.mrb[0].mxu0
    %2189 = vmatprep.mubr.f32.mxu0 0.0
    %2190 = vmatmul.mubr.f32.gmra.mrb[0].mxu0 %v1952
    %v2191 = vpop.f32.mrb[0].mxu0
    %v2192 = vadd.f32 %v2087, %v2191
    %v2193 = vpop.f32.mrb[0].mxu0
    %2194 = vmatprep.mubr.f32.mxu0 0.0
    %2195 = vmatmul.mubr.f32.gmra.mrb[0].mxu0 %v1953
    %v2196 = vpop.f32.mrb[0].mxu0
    %v2197 = vadd.f32 %v2092, %v2196
    %v2198 = vpop.f32.mrb[0].mxu0
    %2199 = vmatprep.mubr.f32.mxu0 0.0
    %2200 = vmatmul.mubr.f32.gmra.mrb[0].mxu0 %v1954
    %v2201 = vpop.f32.mrb[0].mxu0
    %v2202 = vadd.f32 %v2097, %v2201
    %v2203 = vpop.f32.mrb[0].mxu0
    %2204 = vdwg.mxu0
    %v2205 = vld [vmem:[%s8] sm:$0x1]
    %v2207 = vlaneseq
    %v2208 = vshrl.u32 %v2207, 7
    %v2209 = vsub.s32 0, %v2208
    %v2210 = vrot.slane %v2205, %v2209
    %v2212 = vadd.f32 %v2167, %v2210
    %v2213 = vadd.f32 %v2172, %v2210
    %v2214 = vadd.f32 %v2177, %v2210
    %v2215 = vadd.f32 %v2182, %v2210
    %v2216 = vadd.f32 %v2187, %v2210
    %v2217 = vadd.f32 %v2192, %v2210
    %v2218 = vadd.f32 %v2197, %v2210
    %v2219 = vadd.f32 %v2202, %v2210
    %2220 = vst.msk [vmem:[%s9] sm:$0xff] %vm84, %v2212
    %2221 = vst.msk [vmem:[%s9 + $0x8] sm:$0xff] %vm84, %v2213
    %2222 = vst.msk [vmem:[%s9 + $0x10] sm:$0xff] %vm84, %v2214
    %2223 = vst.msk [vmem:[%s9 + $0x18] sm:$0xff] %vm84, %v2215
    %2224 = vst.msk [vmem:[%s9 + $0x20] sm:$0xff] %vm84, %v2216
    %2225 = vst.msk [vmem:[%s9 + $0x28] sm:$0xff] %vm84, %v2217
    %2226 = vst.msk [vmem:[%s9 + $0x30] sm:$0xff] %vm84, %v2218
    %2227 = vst.msk [vmem:[%s9 + $0x38] sm:$0xff] %vm84, %v2219
    // Predicated region
    $region46: #{bigru_baseline.1} parent=1 // pred_check
      _
    $region47: #{bigru_baseline.1} parent=1 // pred_check_branch
      %2229 = sbr.rel (0) target = $region49
    $region48: #{bigru_baseline.1} parent=1 // pred_region
      _
    $region49: #{bigru_baseline.1} parent=1 // pred_fallthru
      _
    // Predicated region
    $region50: #{bigru_baseline.1} parent=1 // pred_check
      _
    $region51: #{bigru_baseline.1} parent=1 // pred_check_branch
      %2231 = sbr.rel (0) target = $region53
    $region52: #{bigru_baseline.1} parent=1 // pred_region
      _
    $region53: #{bigru_baseline.1} parent=1 // pred_fallthru
      _
    %2232 = vsyncpa [#allocation5], 1
    %2233 = vsyncpa [#allocation7], 1

</llo_original>
